<compile_context>
chip_gen: v7x
topology: tpu7x:2x2x1
jax: 0.10.0
libtpu: 0.0.40
codegen_flags: <defaults>
</compile_context>

<pallas_src>
import functools

import jax
import jax.numpy as jnp
from jax import lax
from jax.experimental import pallas as pl
from jax.experimental.pallas import tpu as pltpu


# ----------------------------------------------------------------------------
# Pallas kernels
# ----------------------------------------------------------------------------
def _proj_kernel(x_ref, w_ref, b_ref, o_ref):
    """Fused 1x1-conv projection: (TR, C) @ (C, P_pad) -> bf16 (TR, P_pad)."""
    x = x_ref[0].astype(jnp.bfloat16)                               # (TR, C)
    acc = jnp.dot(x, w_ref[...], preferred_element_type=jnp.float32)
    acc = acc + b_ref[...]                                          # f32 bias add
    o_ref[0] = acc.astype(jnp.bfloat16)


def _attn_kernel(pq_ref, pk_ref, xq_ref, gamma_ref, o_ref,
                 m_sc, l_sc, acc_sc, *, C, C8):
    """Flash-style self-attention over key tiles with online softmax.

    pq_ref/pk_ref hold the fused projections [v | f | g] (bf16, padded width);
    xq_ref is the f32 residual block; gamma is a (1,1) SMEM scalar.
    """
    ki = pl.program_id(2)

    @pl.when(ki == 0)
    def _():
        m_sc[...] = jnp.full(m_sc.shape, -jnp.inf, jnp.float32)
        l_sc[...] = jnp.zeros(l_sc.shape, jnp.float32)
        acc_sc[...] = jnp.zeros(acc_sc.shape, jnp.float32)

    f = pq_ref[0, :, C:C + C8]                 # (TQ, C8) bf16  (query proj)
    g = pk_ref[0, :, C + C8:C + 2 * C8]        # (TK, C8) bf16  (key proj)
    v = pk_ref[0, :, 0:C]                      # (TK, C)  bf16  (value proj)

    # logits[i, j] = <f_i, g_j>; online softmax over the key axis (last dim),
    # identical to torch's softmax(bmm(proj_f, proj_g), dim=-1).
    s = lax.dot_general(f, g, (((1,), (1,)), ((), ())),
                        preferred_element_type=jnp.float32)         # (TQ, TK)

    m_new = jnp.maximum(m_sc[...], jnp.max(s, axis=-1, keepdims=True))
    alpha = jnp.exp(m_sc[...] - m_new)
    p = jnp.exp(s - m_new)
    l_sc[...] = alpha * l_sc[...] + jnp.sum(p, axis=-1, keepdims=True)
    acc_sc[...] = alpha * acc_sc[...] + jnp.dot(
        p.astype(jnp.bfloat16), v, preferred_element_type=jnp.float32)
    m_sc[...] = m_new

    @pl.when(ki == pl.num_programs(2) - 1)
    def _():
        inv_l = pl.reciprocal(l_sc[...], approx=True)                # EUP slot
        out = acc_sc[...] * inv_l                                    # (TQ, C)
        o_ref[0] = gamma_ref[0, 0] * out + xq_ref[0].astype(jnp.float32)


# ----------------------------------------------------------------------------
# Wrapper
# ----------------------------------------------------------------------------
def _pick_tile(n, max_tile):
    """Largest multiple-of-8 divisor of n that is <= max_tile (else full n)."""
    if n <= max_tile:
        return n
    for t in range(max_tile - (max_tile % 8), 7, -8):
        if n % t == 0:
            return t
    return n


def self_attention(x_nchw, params, *, q_tile=256, k_tile=256, r_tile=256):
    """SelfAttention forward.  x_nchw: (B, C, H, W) f32.  Returns (B, C, H, W)."""
    wf, bf, wg, bg, wh, bh, gamma = params
    B, C, H, W = x_nchw.shape
    C8 = wf.shape[1]
    HW = H * W

    # NCHW -> (B, HW, C); pixel index hw = h*W + w matches torch's .view order.
    x = jnp.transpose(x_nchw, (0, 2, 3, 1)).reshape(B, HW, C)

    # Fused projection weight [Wh | Wf | Wg], zero-padded to lane-dense width.
    P = C + 2 * C8
    P_pad = ((P + 127) // 128) * 128
    w_fused = jnp.zeros((C, P_pad), jnp.float32)
    w_fused = (w_fused.at[:, 0:C].set(wh)
               .at[:, C:C + C8].set(wf)
               .at[:, C + C8:P].set(wg)).astype(jnp.bfloat16)
    b_fused = jnp.zeros((1, P_pad), jnp.float32)
    b_fused = (b_fused.at[:, 0:C].set(bh)
               .at[:, C:C + C8].set(bf)
               .at[:, C + C8:P].set(bg))

    vmem_limit = 48 * 1024 * 1024   # v7x-safe scoped limit

    # ---- kernel 1: fused projections, tiled over rows, parallel grid --------
    TR = _pick_tile(HW, r_tile)
    nR = HW // TR
    fgv = pl.pallas_call(
        _proj_kernel,
        out_shape=jax.ShapeDtypeStruct((B, HW, P_pad), jnp.bfloat16),
        grid=(B, nR),
        in_specs=[
            pl.BlockSpec((1, TR, C), lambda b, r: (b, r, 0)),
            pl.BlockSpec((C, P_pad), lambda b, r: (0, 0)),
            pl.BlockSpec((1, P_pad), lambda b, r: (0, 0)),
        ],
        out_specs=pl.BlockSpec((1, TR, P_pad), lambda b, r: (b, r, 0)),
        compiler_params=pltpu.CompilerParams(
            dimension_semantics=("parallel", "parallel"),
            vmem_limit_bytes=vmem_limit),
    )(x, w_fused, b_fused)

    # ---- kernel 2: flash-style attention + gamma residual -------------------
    TQ = _pick_tile(HW, q_tile)
    TK = _pick_tile(HW, k_tile)
    nQ = HW // TQ
    nK = HW // TK
    gamma2 = jnp.reshape(jnp.asarray(gamma, jnp.float32), (1, 1))
    kern = functools.partial(_attn_kernel, C=C, C8=C8)

    y = pl.pallas_call(
        kern,
        out_shape=jax.ShapeDtypeStruct((B, HW, C), jnp.float32),
        grid=(B, nQ, nK),
        in_specs=[
            pl.BlockSpec((1, TQ, P_pad), lambda b, qi, ki: (b, qi, 0)),  # f (query)
            pl.BlockSpec((1, TK, P_pad), lambda b, qi, ki: (b, ki, 0)),  # g,v (key)
            pl.BlockSpec((1, TQ, C), lambda b, qi, ki: (b, qi, 0)),      # residual
            pl.BlockSpec(memory_space=pltpu.MemorySpace.SMEM),            # gamma
        ],
        out_specs=pl.BlockSpec((1, TQ, C), lambda b, qi, ki: (b, qi, 0)),
        scratch_shapes=[
            pltpu.VMEM((TQ, 1), jnp.float32),    # running max m
            pltpu.VMEM((TQ, 1), jnp.float32),    # running denom l
            pltpu.VMEM((TQ, C), jnp.float32),    # running numerator acc
        ],
        compiler_params=pltpu.CompilerParams(
            dimension_semantics=("parallel", "parallel", "arbitrary"),
            vmem_limit_bytes=vmem_limit),
    )(fgv, fgv, x, gamma2)

    return jnp.transpose(y.reshape(B, H, W, C), (0, 3, 1, 2)).astype(x_nchw.dtype)


# ----------------------------------------------------------------------------
# Pure-JAX reference (mirrors the PyTorch forward exactly)
# ----------------------------------------------------------------------------
def _reference(x_nchw, params):
    wf, bf, wg, bg, wh, bh, gamma = params
    B, C, H, W = x_nchw.shape
    xm = jnp.transpose(x_nchw, (0, 2, 3, 1)).reshape(B, H * W, C)
    f = xm @ wf + bf
    g = xm @ wg + bg
    v = xm @ wh + bh
    attn = jax.nn.softmax(jnp.einsum('bik,bjk->bij', f, g), axis=-1)
    out = jnp.einsum('bij,bjc->bic', attn, v)
    y = gamma * out + xm
    return jnp.transpose(y.reshape(B, H, W, C), (0, 3, 1, 2))


# ----------------------------------------------------------------------------
if __name__ == "__main__":
    # Small shapes consistent with the module: C must be >= 8 (C // 8 >= 1).
    B, C, H, W = 2, 64, 16, 16            # HW = 256, C8 = 8
    C8 = C // 8

    key = jax.random.PRNGKey(0)
    kx, kf, kg, kh = jax.random.split(key, 4)

    x = jax.random.normal(kx, (B, C, H, W), jnp.float32)

    # 1x1-conv weights stored as (Cin, Cout) matrices (== torch weight[:, :, 0, 0].T).
    sc_fg = 0.5 / (C ** 0.5)
    sc_h = 1.0 / (C ** 0.5)
    wf = jax.random.normal(kf, (C, C8), jnp.float32) * sc_fg
    bf = jnp.zeros((C8,), jnp.float32)
    wg = jax.random.normal(kg, (C, C8), jnp.float32) * sc_fg
    bg = jnp.zeros((C8,), jnp.float32)
    wh = jax.random.normal(kh, (C, C), jnp.float32) * sc_h
    bh = jnp.zeros((C,), jnp.float32)
    # PyTorch initializes gamma to 0 (output == input); use a nonzero value here
    # so the full attention path is exercised numerically.
    gamma = jnp.asarray(0.5, jnp.float32)

    params = (wf, bf, wg, bg, wh, bh, gamma)

    # Use 128-row tiles so the (parallel) query grid and the (arbitrary) key
    # grid each have 2 points, exercising the online-softmax accumulation.
    fwd = jax.jit(functools.partial(self_attention,
                                    q_tile=128, k_tile=128, r_tile=128))
    out = jax.block_until_ready(fwd(x, params))

    ref = _reference(x, params)
    err = float(jnp.max(jnp.abs(out - ref)))

    assert out.shape == (B, C, H, W), out.shape
    assert bool(jnp.isfinite(out).all())
    # bf16 MXU operands + approx reciprocal give ~1e-2-level differences.
    assert err < 1e-1, f"max abs error vs reference: {err}"
    print("KERNEL_OK")
</pallas_src>

<mosaic_0001>
module attributes {stable_mosaic.version = 11 : i64} {
  func.func @_proj_kernel(%arg0: i32, %arg1: i32, %arg2: memref<1x128x64xf32, #tpu.memory_space<vmem>>, %arg3: memref<64x128xbf16, #tpu.memory_space<vmem>>, %arg4: memref<1x128xf32, #tpu.memory_space<vmem>>, %arg5: memref<1x128x128xbf16, #tpu.memory_space<vmem>>) attributes {dimension_semantics = [#tpu.dimension_semantics<parallel>, #tpu.dimension_semantics<parallel>], iteration_bounds = array<i64: 2, 2>, scalar_prefetch = 0 : i64, scratch_operands = 0 : i64, tpu.core_type = #tpu.core_type<tc>, window_params = [{transform_indices = @transform_0, window_bounds = array<i64: 1, 128, 64>}, {pipeline_mode = #tpu.pipeline_mode<synchronous>, transform_indices = @transform_1, window_bounds = array<i64: 64, 128>}, {pipeline_mode = #tpu.pipeline_mode<synchronous>, transform_indices = @transform_2, window_bounds = array<i64: 1, 128>}, {transform_indices = @transform_3, window_bounds = array<i64: 1, 128, 128>}]} {
    %c0 = arith.constant 0 : index
    %c0_0 = arith.constant 0 : index
    %c0_1 = arith.constant 0 : index
    %0 = vector.load %arg2[%c0, %c0_0, %c0_1] : memref<1x128x64xf32, #tpu.memory_space<vmem>>, vector<1x128x64xf32>
    %1 = vector.shape_cast %0 : vector<1x128x64xf32> to vector<128x64xf32>
    %2 = arith.truncf %1 : vector<128x64xf32> to vector<128x64xbf16>
    %c0_2 = arith.constant 0 : index
    %c0_3 = arith.constant 0 : index
    %3 = vector.load %arg3[%c0_2, %c0_3] : memref<64x128xbf16, #tpu.memory_space<vmem>>, vector<64x128xbf16>
    %cst = arith.constant dense<0.000000e+00> : vector<128x128xf32>
    %4 = tpu.matmul %2, %3, %cst {dimension_numbers = #tpu.dot_dimension_numbers<[1], [0], [0], [1], [0, 0, 1, 1], [], []>} : vector<128x64xbf16>, vector<64x128xbf16>, vector<128x128xf32> -> vector<128x128xf32>
    %c0_4 = arith.constant 0 : index
    %c0_5 = arith.constant 0 : index
    %5 = vector.load %arg4[%c0_4, %c0_5] : memref<1x128xf32, #tpu.memory_space<vmem>>, vector<1x128xf32>
    %6 = vector.broadcast %5 : vector<1x128xf32> to vector<128x128xf32>
    %7 = arith.addf %4, %6 : vector<128x128xf32>
    %8 = arith.truncf %7 : vector<128x128xf32> to vector<128x128xbf16>
    %c0_6 = arith.constant 0 : index
    %c0_7 = arith.constant 0 : index
    %c0_8 = arith.constant 0 : index
    %9 = vector.load %arg5[%c0_6, %c0_7, %c0_8] : memref<1x128x128xbf16, #tpu.memory_space<vmem>>, vector<1x128x128xbf16>
    %10 = vector.shape_cast %9 : vector<1x128x128xbf16> to vector<128x128xbf16>
    %11 = vector.shape_cast %8 : vector<128x128xbf16> to vector<1x128x128xbf16>
    tpu.vector_store %arg5[%c0_6, %c0_7, %c0_8], %11 {strides = array<i32>} : memref<1x128x128xbf16, #tpu.memory_space<vmem>>, vector<1x128x128xbf16>,
    return
  }
  func.func @transform_0(%arg0: i32, %arg1: i32) -> (i32, i32, i32) {
    %c0_i32 = arith.constant 0 : i32
    %c0_i32_0 = arith.constant 0 : i32
    return %arg0, %arg1, %c0_i32 : i32, i32, i32
  }
  func.func @transform_1(%arg0: i32, %arg1: i32) -> (i32, i32) {
    %c0_i32 = arith.constant 0 : i32
    %c0_i32_0 = arith.constant 0 : i32
    %c0_i32_1 = arith.constant 0 : i32
    return %c0_i32, %c0_i32_0 : i32, i32
  }
  func.func @transform_2(%arg0: i32, %arg1: i32) -> (i32, i32) {
    %c0_i32 = arith.constant 0 : i32
    %c0_i32_0 = arith.constant 0 : i32
    %c0_i32_1 = arith.constant 0 : i32
    return %c0_i32, %c0_i32_0 : i32, i32
  }
  func.func @transform_3(%arg0: i32, %arg1: i32) -> (i32, i32, i32) {
    %c0_i32 = arith.constant 0 : i32
    %c0_i32_0 = arith.constant 0 : i32
    return %arg0, %arg1, %c0_i32 : i32, i32, i32
  }
}

module attributes {stable_mosaic.version = 11 : i64} {
  func.func @_attn_kernel(%arg0: i32, %arg1: i32, %arg2: i32, %arg3: memref<1x128x128xbf16, #tpu.memory_space<vmem>>, %arg4: memref<1x128x128xbf16, #tpu.memory_space<vmem>>, %arg5: memref<1x128x64xf32, #tpu.memory_space<vmem>>, %arg6: memref<1x1xf32, #tpu.memory_space<smem>>, %arg7: memref<1x128x64xf32, #tpu.memory_space<vmem>>, %arg8: memref<128x1xf32, #tpu.memory_space<vmem>>, %arg9: memref<128x1xf32, #tpu.memory_space<vmem>>, %arg10: memref<128x64xf32, #tpu.memory_space<vmem>>) attributes {dimension_semantics = [#tpu.dimension_semantics<parallel>, #tpu.dimension_semantics<parallel>, #tpu.dimension_semantics<arbitrary>], iteration_bounds = array<i64: 2, 2, 2>, scalar_prefetch = 0 : i64, scratch_operands = 3 : i64, tpu.core_type = #tpu.core_type<tc>, window_params = [{transform_indices = @transform_0, window_bounds = array<i64: 1, 128, 128>}, {transform_indices = @transform_1, window_bounds = array<i64: 1, 128, 128>}, {transform_indices = @transform_2, window_bounds = array<i64: 1, 128, 64>}, {transform_indices = @transform_3, window_bounds = array<i64: 1, 1>}, {transform_indices = @transform_4, window_bounds = array<i64: 1, 128, 64>}]} {
    %c0_i32 = arith.constant 0 : i32
    %0 = arith.cmpi eq, %arg2, %c0_i32 : i32
    %1 = arith.extui %0 : i1 to i32
    %c0_i32_0 = arith.constant 0 : i32
    %2 = arith.cmpi ne, %1, %c0_i32_0 : i32
    scf.if %2 {
      %cst_25 = arith.constant 0xFF800000 : f32
      %37 = vector.broadcast %cst_25 : f32 to vector<128x1xf32>
      %c0_26 = arith.constant 0 : index
      %c0_27 = arith.constant 0 : index
      %38 = vector.load %arg8[%c0_26, %c0_27] : memref<128x1xf32, #tpu.memory_space<vmem>>, vector<128x1xf32>
      tpu.vector_store %arg8[%c0_26, %c0_27], %37 {strides = array<i32>} : memref<128x1xf32, #tpu.memory_space<vmem>>, vector<128x1xf32>,
      %cst_28 = arith.constant 0.000000e+00 : f32
      %39 = vector.broadcast %cst_28 : f32 to vector<128x1xf32>
      %c0_29 = arith.constant 0 : index
      %c0_30 = arith.constant 0 : index
      %40 = vector.load %arg9[%c0_29, %c0_30] : memref<128x1xf32, #tpu.memory_space<vmem>>, vector<128x1xf32>
      tpu.vector_store %arg9[%c0_29, %c0_30], %39 {strides = array<i32>} : memref<128x1xf32, #tpu.memory_space<vmem>>, vector<128x1xf32>,
      %cst_31 = arith.constant 0.000000e+00 : f32
      %41 = vector.broadcast %cst_31 : f32 to vector<128x64xf32>
      %c0_32 = arith.constant 0 : index
      %c0_33 = arith.constant 0 : index
      %42 = vector.load %arg10[%c0_32, %c0_33] : memref<128x64xf32, #tpu.memory_space<vmem>>, vector<128x64xf32>
      tpu.vector_store %arg10[%c0_32, %c0_33], %41 {strides = array<i32>} : memref<128x64xf32, #tpu.memory_space<vmem>>, vector<128x64xf32>,
    } else {
    }
    %c0 = arith.constant 0 : index
    %c0_1 = arith.constant 0 : index
    %c64 = arith.constant 64 : index
    %3 = vector.load %arg3[%c0, %c0_1, %c64] : memref<1x128x128xbf16, #tpu.memory_space<vmem>>, vector<1x128x8xbf16>
    %4 = vector.shape_cast %3 : vector<1x128x8xbf16> to vector<128x8xbf16>
    %c0_2 = arith.constant 0 : index
    %c0_3 = arith.constant 0 : index
    %c72 = arith.constant 72 : index
    %5 = vector.load %arg4[%c0_2, %c0_3, %c72] : memref<1x128x128xbf16, #tpu.memory_space<vmem>>, vector<1x128x8xbf16>
    %6 = vector.shape_cast %5 : vector<1x128x8xbf16> to vector<128x8xbf16>
    %c0_4 = arith.constant 0 : index
    %c0_5 = arith.constant 0 : index
    %c0_6 = arith.constant 0 : index
    %7 = vector.load %arg4[%c0_4, %c0_5, %c0_6] : memref<1x128x128xbf16, #tpu.memory_space<vmem>>, vector<1x128x64xbf16>
    %8 = vector.shape_cast %7 : vector<1x128x64xbf16> to vector<128x64xbf16>
    %cst = arith.constant dense<0.000000e+00> : vector<128x128xf32>
    %9 = tpu.matmul %4, %6, %cst {dimension_numbers = #tpu.dot_dimension_numbers<[1], [1], [0], [0], [0, 0, 1, 0], [], []>} : vector<128x8xbf16>, vector<128x8xbf16>, vector<128x128xf32> -> vector<128x128xf32>
    %c0_7 = arith.constant 0 : index
    %c0_8 = arith.constant 0 : index
    %10 = vector.load %arg8[%c0_7, %c0_8] : memref<128x1xf32, #tpu.memory_space<vmem>>, vector<128x1xf32>
    %cst_9 = arith.constant dense<0xFF800000> : vector<128xf32>
    %11 = vector.multi_reduction <maximumf>, %9, %cst_9 [1] : vector<128x128xf32> to vector<128xf32>
    %12 = vector.shape_cast %11 : vector<128xf32> to vector<128x1xf32>
    %13 = arith.maximumf %10, %12 : vector<128x1xf32>
    %c0_10 = arith.constant 0 : index
    %c0_11 = arith.constant 0 : index
    %14 = vector.load %arg8[%c0_10, %c0_11] : memref<128x1xf32, #tpu.memory_space<vmem>>, vector<128x1xf32>
    %15 = arith.subf %14, %13 : vector<128x1xf32>
    %16 = math.exp %15 : vector<128x1xf32>
    %17 = vector.broadcast %13 : vector<128x1xf32> to vector<128x128xf32>
    %18 = arith.subf %9, %17 : vector<128x128xf32>
    %19 = math.exp %18 : vector<128x128xf32>
    %c0_12 = arith.constant 0 : index
    %c0_13 = arith.constant 0 : index
    %20 = vector.load %arg9[%c0_12, %c0_13] : memref<128x1xf32, #tpu.memory_space<vmem>>, vector<128x1xf32>
    %21 = arith.mulf %16, %20 : vector<128x1xf32>
    %cst_14 = arith.constant dense<0.000000e+00> : vector<128xf32>
    %22 = vector.multi_reduction <add>, %19, %cst_14 [1] : vector<128x128xf32> to vector<128xf32>
    %23 = vector.shape_cast %22 : vector<128xf32> to vector<128x1xf32>
    %24 = arith.addf %21, %23 : vector<128x1xf32>
    %c0_15 = arith.constant 0 : index
    %c0_16 = arith.constant 0 : index
    %25 = vector.load %arg9[%c0_15, %c0_16] : memref<128x1xf32, #tpu.memory_space<vmem>>, vector<128x1xf32>
    tpu.vector_store %arg9[%c0_15, %c0_16], %24 {strides = array<i32>} : memref<128x1xf32, #tpu.memory_space<vmem>>, vector<128x1xf32>,
    %c0_17 = arith.constant 0 : index
    %c0_18 = arith.constant 0 : index
    %26 = vector.load %arg10[%c0_17, %c0_18] : memref<128x64xf32, #tpu.memory_space<vmem>>, vector<128x64xf32>
    %27 = vector.broadcast %16 : vector<128x1xf32> to vector<128x64xf32>
    %28 = arith.mulf %27, %26 : vector<128x64xf32>
    %29 = arith.truncf %19 : vector<128x128xf32> to vector<128x128xbf16>
    %cst_19 = arith.constant dense<0.000000e+00> : vector<128x64xf32>
    %30 = tpu.matmul %29, %8, %cst_19 {dimension_numbers = #tpu.dot_dimension_numbers<[1], [0], [0], [1], [0, 0, 1, 1], [], []>} : vector<128x128xbf16>, vector<128x64xbf16>, vector<128x64xf32> -> vector<128x64xf32>
    %31 = arith.addf %28, %30 : vector<128x64xf32>
    %c0_20 = arith.constant 0 : index
    %c0_21 = arith.constant 0 : index
    %32 = vector.load %arg10[%c0_20, %c0_21] : memref<128x64xf32, #tpu.memory_space<vmem>>, vector<128x64xf32>
    tpu.vector_store %arg10[%c0_20, %c0_21], %31 {strides = array<i32>} : memref<128x64xf32, #tpu.memory_space<vmem>>, vector<128x64xf32>,
    %c0_22 = arith.constant 0 : index
    %c0_23 = arith.constant 0 : index
    %33 = vector.load %arg8[%c0_22, %c0_23] : memref<128x1xf32, #tpu.memory_space<vmem>>, vector<128x1xf32>
    tpu.vector_store %arg8[%c0_22, %c0_23], %13 {strides = array<i32>} : memref<128x1xf32, #tpu.memory_space<vmem>>, vector<128x1xf32>,
    %c1_i32 = arith.constant 1 : i32
    %34 = arith.cmpi eq, %arg2, %c1_i32 : i32
    %35 = arith.extui %34 : i1 to i32
    %c0_i32_24 = arith.constant 0 : i32
    %36 = arith.cmpi ne, %35, %c0_i32_24 : i32
    scf.if %36 {
      %c0_25 = arith.constant 0 : index
      %c0_26 = arith.constant 0 : index
      %37 = vector.load %arg9[%c0_25, %c0_26] : memref<128x1xf32, #tpu.memory_space<vmem>>, vector<128x1xf32>
      %38 = tpu.reciprocal %37 {approx = true} : vector<128x1xf32> -> vector<128x1xf32>
      %c0_27 = arith.constant 0 : index
      %c0_28 = arith.constant 0 : index
      %39 = vector.load %arg10[%c0_27, %c0_28] : memref<128x64xf32, #tpu.memory_space<vmem>>, vector<128x64xf32>
      %40 = vector.broadcast %38 : vector<128x1xf32> to vector<128x64xf32>
      %41 = arith.mulf %39, %40 : vector<128x64xf32>
      %c0_29 = arith.constant 0 : index
      %c0_30 = arith.constant 0 : index
      %42 = memref.load %arg6[%c0_29, %c0_30] : memref<1x1xf32, #tpu.memory_space<smem>>
      %43 = vector.broadcast %42 : f32 to vector<128x64xf32>
      %44 = arith.mulf %43, %41 : vector<128x64xf32>
      %c0_31 = arith.constant 0 : index
      %c0_32 = arith.constant 0 : index
      %c0_33 = arith.constant 0 : index
      %45 = vector.load %arg5[%c0_31, %c0_32, %c0_33] : memref<1x128x64xf32, #tpu.memory_space<vmem>>, vector<1x128x64xf32>
      %46 = vector.shape_cast %45 : vector<1x128x64xf32> to vector<128x64xf32>
      %47 = arith.addf %44, %46 : vector<128x64xf32>
      %c0_34 = arith.constant 0 : index
      %c0_35 = arith.constant 0 : index
      %c0_36 = arith.constant 0 : index
      %48 = vector.load %arg7[%c0_34, %c0_35, %c0_36] : memref<1x128x64xf32, #tpu.memory_space<vmem>>, vector<1x128x64xf32>
      %49 = vector.shape_cast %48 : vector<1x128x64xf32> to vector<128x64xf32>
      %50 = vector.shape_cast %47 : vector<128x64xf32> to vector<1x128x64xf32>
      tpu.vector_store %arg7[%c0_34, %c0_35, %c0_36], %50 {strides = array<i32>} : memref<1x128x64xf32, #tpu.memory_space<vmem>>, vector<1x128x64xf32>,
    } else {
    }
    return
  }
  func.func @transform_0(%arg0: i32, %arg1: i32, %arg2: i32) -> (i32, i32, i32) {
    %c0_i32 = arith.constant 0 : i32
    %c0_i32_0 = arith.constant 0 : i32
    return %arg0, %arg1, %c0_i32 : i32, i32, i32
  }
  func.func @transform_1(%arg0: i32, %arg1: i32, %arg2: i32) -> (i32, i32, i32) {
    %c0_i32 = arith.constant 0 : i32
    %c0_i32_0 = arith.constant 0 : i32
    return %arg0, %arg2, %c0_i32 : i32, i32, i32
  }
  func.func @transform_2(%arg0: i32, %arg1: i32, %arg2: i32) -> (i32, i32, i32) {
    %c0_i32 = arith.constant 0 : i32
    %c0_i32_0 = arith.constant 0 : i32
    return %arg0, %arg1, %c0_i32 : i32, i32, i32
  }
  func.func @transform_3(%arg0: i32, %arg1: i32, %arg2: i32) -> (i32, i32) {
    %c0_i32 = arith.constant 0 : i32
    %c0_i32_0 = arith.constant 0 : i32
    %c0_i32_1 = arith.constant 0 : i32
    return %c0_i32, %c0_i32_0 : i32, i32
  }
  func.func @transform_4(%arg0: i32, %arg1: i32, %arg2: i32) -> (i32, i32, i32) {
    %c0_i32 = arith.constant 0 : i32
    %c0_i32_0 = arith.constant 0 : i32
    return %arg0, %arg1, %c0_i32 : i32, i32, i32
  }
}

</mosaic_0001>

<llo_original>
// kernel: self_attention.2
$region0: #{self_attention.2}
  #allocation0 [shape = 'u32[]', space=smem, size = 0x4, offset = 0x4, fixed_abs, tag = 'smem constant byte address 0x4 - core index']
  #allocation1 [shape = 'u32[144,128]{1,0:T(1,128)}', space=vmem, size = 0x12000, scoped, tag = 'internal scratch']
  %s0 = inlined_call_operand.vmem [shape: f32[2,256,64], index: 0, kind: input, shape index: {}]
  %s1 = inlined_call_operand.vmem [shape: bf16[64,128], index: 1, kind: input, shape index: {}]
  %s2 = inlined_call_operand.vmem [shape: f32[1,128], index: 2, kind: input, shape index: {}]
  %s3 = inlined_call_operand.vmem [shape: bf16[2,256,128], index: 3, kind: output, shape index: {}]
  %s4 = sld [smem:[#allocation0]]
  $region45: #{self_attention.2} parent=0
    _
  %s6 = ssub.s32 1, %s4
  %s7 = scalar_select 0, %s6, %s4
  loop: start=0, step=1, limit=6
  $region2: #{self_attention.2} parent=0 // loop_pre_header
    _
  $region3: #{self_attention.2} parent=0 // loop_header
    %s9 = sphi 0, %s13
    %p10 = scmp.ge.s32.totalorder %s9, 6
    %s16 = sphi 0, %s28
    %s17 = sphi 0, %s24
    %s18 = sphi 0, %s16
    %s19 = sphi 0, %s17
    %s20 = sphi 0, %s18
    %s21 = sphi 0, %s19
    %s33 = sphi 0, %s35
    %s36 = sphi 0, %s33
    %s37 = sphi 0, %s36
    %s53 = sphi 0, %s37
    %s57 = sphi 0, %s57
    %s59 = sphi 0, %s57
    %s60 = sphi 0, %s59
    %s74 = sphi 0, %s60
    %s78 = sphi 0, %s78
    %s80 = sphi 0, %s78
    %s81 = sphi 0, %s80
    %s95 = sphi 0, %s81
    %s103 = sphi 0, %s105
    %s106 = sphi 0, %s103
    %s107 = sphi 0, %s106
    %s123 = sphi 0, %s107
  $region4: #{self_attention.2} parent=0 // loop_header_branch
    %12 = sbr.rel (%p10) target = $region8
  $region5: #{self_attention.2} parent=0 // loop_body
    %s14 = ssub.s32 %s9, 1
    %s15 = ssub.s32 %s9, 2
    %s22 = sadd.s32 1, %s17
    %p23 = scmp.ge.s32.totalorder %s22, 2
    %s24 = scalar_select %p23, 0, %s22
    %s25 = sadd.s32 1, %s16
    %s26 = scalar_select %p23, %s25, %s16
    %p27 = scmp.ge.s32.totalorder %s26, 2
    %s28 = scalar_select %p27, 0, %s26
    %s29 = ssub.s32 %s16, %s28
    %s30 = ssub.s32 %s17, %s24
    %s31 = sor.u32 %s29, %s30
    %p32 = scmp.eq.s32.totalorder %s31, 0
    %s34 = sadd.s32 %s33, 1
    %s35 = scalar_select %p32, %s33, %s34
    %p38 = pneg %p32
    %p39 = scmp.eq.s32.totalorder %s9, 3
    %p40 = por %p38, %p39
    %p41 = scmp.ne.s32.totalorder %s33, %s36
    %p42 = scmp.eq.s32.totalorder %s9, 0
    %p43 = por %p41, %p42
    %p44 = scmp.ne.s32.totalorder %s33, %s36
    %p45 = scmp.eq.s32.totalorder %s14, 3
    %p46 = por %p44, %p45
    %p47 = scmp.ne.s32.totalorder %s36, %s37
    %p48 = scmp.eq.s32.totalorder %s14, 0
    %p49 = por %p47, %p48
    %p50 = scmp.ne.s32.totalorder %s36, %s37
    %p51 = scmp.eq.s32.totalorder %s15, 3
    %p52 = por %p50, %p51
    %p54 = scmp.ne.s32.totalorder %s37, %s53
    %p55 = scmp.eq.s32.totalorder %s15, 0
    %p56 = por %p54, %p55
    %s58 = sadd.s32 %s57, 1
    %p61 = scmp.eq.s32.totalorder %s9, 3
    %p62 = scmp.ne.s32.totalorder %s57, %s59
    %p63 = scmp.eq.s32.totalorder %s9, 0
    %p64 = por %p62, %p63
    %p65 = scmp.ne.s32.totalorder %s57, %s59
    %p66 = scmp.eq.s32.totalorder %s14, 3
    %p67 = por %p65, %p66
    %p68 = scmp.ne.s32.totalorder %s59, %s60
    %p69 = scmp.eq.s32.totalorder %s14, 0
    %p70 = por %p68, %p69
    %p71 = scmp.ne.s32.totalorder %s59, %s60
    %p72 = scmp.eq.s32.totalorder %s15, 3
    %p73 = por %p71, %p72
    %p75 = scmp.ne.s32.totalorder %s60, %s74
    %p76 = scmp.eq.s32.totalorder %s15, 0
    %p77 = por %p75, %p76
    %s79 = sadd.s32 %s78, 1
    %p82 = scmp.eq.s32.totalorder %s9, 3
    %p83 = scmp.ne.s32.totalorder %s78, %s80
    %p84 = scmp.eq.s32.totalorder %s9, 0
    %p85 = por %p83, %p84
    %p86 = scmp.ne.s32.totalorder %s78, %s80
    %p87 = scmp.eq.s32.totalorder %s14, 3
    %p88 = por %p86, %p87
    %p89 = scmp.ne.s32.totalorder %s80, %s81
    %p90 = scmp.eq.s32.totalorder %s14, 0
    %p91 = por %p89, %p90
    %p92 = scmp.ne.s32.totalorder %s80, %s81
    %p93 = scmp.eq.s32.totalorder %s15, 3
    %p94 = por %p92, %p93
    %p96 = scmp.ne.s32.totalorder %s81, %s95
    %p97 = scmp.eq.s32.totalorder %s15, 0
    %p98 = por %p96, %p97
    %s99 = ssub.s32 %s16, %s28
    %s100 = ssub.s32 %s17, %s24
    %s101 = sor.u32 %s99, %s100
    %p102 = scmp.eq.s32.totalorder %s101, 0
    %s104 = sadd.s32 %s103, 1
    %s105 = scalar_select %p102, %s103, %s104
    %p108 = pneg %p102
    %p109 = scmp.eq.s32.totalorder %s9, 3
    %p110 = por %p108, %p109
    %p111 = scmp.ne.s32.totalorder %s103, %s106
    %p112 = scmp.eq.s32.totalorder %s9, 0
    %p113 = por %p111, %p112
    %p114 = scmp.ne.s32.totalorder %s103, %s106
    %p115 = scmp.eq.s32.totalorder %s14, 3
    %p116 = por %p114, %p115
    %p117 = scmp.ne.s32.totalorder %s106, %s107
    %p118 = scmp.eq.s32.totalorder %s14, 0
    %p119 = por %p117, %p118
    %p120 = scmp.ne.s32.totalorder %s106, %s107
    %p121 = scmp.eq.s32.totalorder %s15, 3
    %p122 = por %p120, %p121
    %p124 = scmp.ne.s32.totalorder %s107, %s123
    %p125 = scmp.eq.s32.totalorder %s15, 0
    %p126 = por %p124, %p125
    %p127 = scmp.le.s32.totalorder 1, %s9
    %p128 = scmp.lt.s32.totalorder %s9, 5
    %p129 = pnand %p127, %p128
    %p130 = pneg %p129
    // Predicated region
    $region9: #{self_attention.2} parent=5 // pred_check
      _
    $region10: #{self_attention.2} parent=5 // pred_check_branch
      %132 = sbr.rel (%p129) target = $region12
    $region11: #{self_attention.2} parent=5 // pred_region
      %s133 = ssub.s32 %s9, 1
      // Predicated region
      $region13: #{self_attention.2} parent=11 // pred_check
        %p134 = pneg %p70
      $region14: #{self_attention.2} parent=11 // pred_check_branch
        %136 = sbr.rel (%p134) target = $region16
      $region15: #{self_attention.2} parent=11 // pred_region
        _
      $region16: #{self_attention.2} parent=11 // pred_fallthru
        _
      // Predicated region
      $region17: #{self_attention.2} parent=11 // pred_check
        %p137 = pneg %p91
      $region18: #{self_attention.2} parent=11 // pred_check_branch
        %139 = sbr.rel (%p137) target = $region20
      $region19: #{self_attention.2} parent=11 // pred_region
        _
      $region20: #{self_attention.2} parent=11 // pred_fallthru
        _
    $region12: #{self_attention.2} parent=5 // pred_fallthru
      _
    %p140 = scmp.lt.s32.totalorder %s9, 4
    // Predicated region
    $region21: #{self_attention.2} parent=5 // pred_check
      %p141 = pneg %p140
    $region22: #{self_attention.2} parent=5 // pred_check_branch
      %143 = sbr.rel (%p141) target = $region24
    $region23: #{self_attention.2} parent=5 // pred_region
      // Predicated region
      $region25: #{self_attention.2} parent=23 // pred_check
        %p144 = pneg %p43
      $region26: #{self_attention.2} parent=23 // pred_check_branch
        %146 = sbr.rel (%p144) target = $region28
      $region27: #{self_attention.2} parent=23 // pred_region
        %s147 = smul.u32 16, %s17
        %p148 = scmp.lt.s32.totalorder %s16, 1
        %s149 = scalar_select %p148, %s16, 1
        %p150 = scmp.lt.s32.totalorder %s147, 31
        %s151 = scalar_select %p150, %s147, 31
        %s152 = smul.addr %s149, 32
        %s153 = sadd.s32 %s151, %s152
        %s154 = smul.addr %s153, 8
        %s155 = scalar_lea.vmem %s0, %s154
        %s156 = smul.u32 16, %s17
      $region28: #{self_attention.2} parent=23 // pred_fallthru
        _
    $region24: #{self_attention.2} parent=5 // pred_fallthru
      _
    %p157 = scmp.le.s32.totalorder 1, %s9
    %p158 = scmp.lt.s32.totalorder %s9, 5
    %p159 = pnand %p157, %p158
    %p160 = pneg %p159
    // Predicated region
    $region29: #{self_attention.2} parent=5 // pred_check
      _
    $region30: #{self_attention.2} parent=5 // pred_check_branch
      %162 = sbr.rel (%p159) target = $region32
    $region31: #{self_attention.2} parent=5 // pred_region
      %s163 = ssub.s32 %s9, 1
      %s164 = smul.u32 16, %s19
      %p165 = scmp.lt.s32.totalorder %s18, 1
      %s166 = scalar_select %p165, %s18, 1
      %p167 = scmp.lt.s32.totalorder %s164, 31
      %s168 = scalar_select %p167, %s164, 31
      %s169 = smul.addr %s166, 32
      %s170 = sadd.s32 %s168, %s169
      %s171 = smul.addr %s170, 8
      %s172 = scalar_lea.vmem %s0, %s171
      %p173 = pneg %p49
      %p174 = pneg %p46
      %p175 = pneg %p70
      %p176 = pneg %p67
      %p177 = pneg %p91
      %p178 = pneg %p88
      %p179 = pneg %p119
      %p180 = pneg %p116
      %s181 = smul.u32 16, %s19
      %p182 = scmp.lt.s32.totalorder %s18, 1
      %s183 = scalar_select %p182, %s18, 1
      %p184 = scmp.lt.s32.totalorder %s181, 31
      %s185 = scalar_select %p184, %s181, 31
      %s186 = smul.addr %s183, 32
      %s187 = sadd.s32 %s185, %s186
      %s188 = smul.addr %s187, 4
      %s189 = scalar_lea.vmem %s3, %s188
      %s190 = smul.u32 16, %s19
      %p191 = scmp.lt.s32.totalorder %s18, 1
      %s192 = scalar_select %p191, %s18, 1
      %p193 = scmp.lt.s32.totalorder %s190, 31
      %s194 = scalar_select %p193, %s190, 31
      %s195 = smul.addr %s192, 32
      %s196 = sadd.s32 %s194, %s195
      %s197 = smul.addr %s196, 8
      %s198 = scalar_lea.vmem %s0, %s197
      %s199 = smul.u32 16, %s19
      %s200 = smul.u32 16, %s19
      %p201 = scmp.lt.s32.totalorder %s18, 1
      %s202 = scalar_select %p201, %s18, 1
      %p203 = scmp.lt.s32.totalorder %s200, 31
      %s204 = scalar_select %p203, %s200, 31
      %s205 = smul.addr %s202, 32
      %s206 = sadd.s32 %s204, %s205
      %s207 = smul.addr %s206, 4
      %s208 = scalar_lea.vmem %s3, %s207
      %s209 = smul.u32 16, %s19
      %v211 = vld [vmem:[%s198] sm:$0xff]
      %v212 = vld [vmem:[%s198 + $0x8] sm:$0xff]
      %v213 = vld [vmem:[%s198 + $0x10] sm:$0xff]
      %v214 = vld [vmem:[%s198 + $0x18] sm:$0xff]
      %v215 = vld [vmem:[%s198 + $0x20] sm:$0xff]
      %v216 = vld [vmem:[%s198 + $0x28] sm:$0xff]
      %v217 = vld [vmem:[%s198 + $0x30] sm:$0xff]
      %v218 = vld [vmem:[%s198 + $0x38] sm:$0xff]
      %v219 = vld [vmem:[%s198 + $0x40] sm:$0xff]
      %v220 = vld [vmem:[%s198 + $0x48] sm:$0xff]
      %v221 = vld [vmem:[%s198 + $0x50] sm:$0xff]
      %v222 = vld [vmem:[%s198 + $0x58] sm:$0xff]
      %v223 = vld [vmem:[%s198 + $0x60] sm:$0xff]
      %v224 = vld [vmem:[%s198 + $0x68] sm:$0xff]
      %v225 = vld [vmem:[%s198 + $0x70] sm:$0xff]
      %v226 = vld [vmem:[%s198 + $0x78] sm:$0xff]
      %v227 = vpack.c.bf16 %v212, %v211
      %v228 = vpack.c.bf16 %v214, %v213
      %v229 = vpack.c.bf16 %v216, %v215
      %v230 = vpack.c.bf16 %v218, %v217
      %v231 = vpack.c.bf16 %v220, %v219
      %v232 = vpack.c.bf16 %v222, %v221
      %v233 = vpack.c.bf16 %v224, %v223
      %v234 = vpack.c.bf16 %v226, %v225
      %v235 = vld [vmem:[%s1] sm:$0xf]
      %v236 = vld [vmem:[%s1 + $0x4] sm:$0xf]
      %v237 = vld [vmem:[%s1 + $0x8] sm:$0xf]
      %v238 = vld [vmem:[%s1 + $0xc] sm:$0xf]
      %v239 = vld [vmem:[%s1 + $0x10] sm:$0xf]
      %v240 = vld [vmem:[%s1 + $0x14] sm:$0xf]
      %v241 = vld [vmem:[%s1 + $0x18] sm:$0xf]
      %v242 = vld [vmem:[%s1 + $0x1c] sm:$0xf]
      %v243 = vld [vmem:[%s2] sm:$0x1]
      %v245 = vlaneseq
      %v246 = vshrl.u32 %v245, 7
      %v247 = vsub.s32 0, %v246
      %v248 = vrot.slane %v243, %v247
      %v258 = vunpack.c.l.b16 %v235
      %v259 = vunpack.c.l.b16 %v236
      %v260 = vunpack.c.l.b16 %v237
      %v261 = vunpack.c.l.b16 %v238
      %v262 = vunpack.c.l.b16 %v239
      %v263 = vunpack.c.l.b16 %v240
      %v264 = vunpack.c.l.b16 %v241
      %v265 = vunpack.c.l.b16 %v242
      %v266 = vpack.c.b16 %v259, %v258
      %v267 = vpack.c.b16 %v261, %v260
      %v268 = vpack.c.b16 %v263, %v262
      %v269 = vpack.c.b16 %v265, %v264
      %vm274 = vcmask 523264
      %v276 = vsel %vm274, %v227, 0
      %v279 = vsel %vm274, %v228, 0
      %v282 = vsel %vm274, %v229, 0
      %v285 = vsel %vm274, %v230, 0
      %v288 = vsel %vm274, %v231, 0
      %v291 = vsel %vm274, %v232, 0
      %v294 = vsel %vm274, %v233, 0
      %v297 = vsel %vm274, %v234, 0
      %299 = vmatprep.subr.bf16.mxu0 0
      %300 = vmatpush1.bf16.msra.mxu0 %v266
      %301 = vmatprep.subr.bf16.mxu0 0
      %302 = vmatpush1.bf16.msra.mxu0 %v267
      %303 = vmatprep.subr.bf16.mxu0 0
      %304 = vmatpush1.bf16.msra.mxu0 %v268
      %305 = vmatprep.subr.bf16.mxu0 0
      %306 = vmatpush1.bf16.msra.mxu0 %v269
      %307 = vmatprep.subr.bf16.mxu0 0
      %308 = vmatpush1.bf16.msra.mxu0 0
      %309 = vmatprep.subr.bf16.mxu0 0
      %310 = vmatpush1.bf16.msra.mxu0 0
      %311 = vmatprep.subr.bf16.mxu0 0
      %312 = vmatpush1.bf16.msra.mxu0 0
      %313 = vmatprep.subr.bf16.mxu0 0
      %314 = vmatpush1.bf16.msra.mxu0 0
      %315 = vmatprep.subr.bf16.mxu0 0
      %316 = vmatpush1.bf16.msra.mxu0 0
      %317 = vmatprep.subr.bf16.mxu0 0
      %318 = vmatpush1.bf16.msra.mxu0 0
      %319 = vmatprep.subr.bf16.mxu0 0
      %320 = vmatpush1.bf16.msra.mxu0 0
      %321 = vmatprep.subr.bf16.mxu0 0
      %322 = vmatpush1.bf16.msra.mxu0 0
      %323 = vmatprep.subr.bf16.mxu0 0
      %324 = vmatpush1.bf16.msra.mxu0 0
      %325 = vmatprep.subr.bf16.mxu0 0
      %326 = vmatpush1.bf16.msra.mxu0 0
      %327 = vmatprep.subr.bf16.mxu0 0
      %328 = vmatpush1.bf16.msra.mxu0 0
      %329 = vmatprep.subr.bf16.mxu0 0
      %330 = vmatpush1.bf16.msra.mxu0 0
      %331 = vmatprep.mubr.bf16.mxu0 0
      %332 = vmatmul.mubr.bf16.gmra.mrb[0].mxu0 %v276
      %v333 = vpop.f32.mrb[0].mxu0
      %v334 = vadd.f32 %v248, %v333
      %v335 = vpop.f32.mrb[0].mxu0
      %v336 = vpop.f32.mrb[0].mxu0
      %v337 = vadd.f32 %v248, %v336
      %v338 = vpop.f32.mrb[0].mxu0
      %339 = vmatprep.mubr.bf16.mxu0 0
      %340 = vmatmul.mubr.bf16.gmra.mrb[0].mxu0 %v279
      %v341 = vpop.f32.mrb[0].mxu0
      %v342 = vadd.f32 %v248, %v341
      %v343 = vpop.f32.mrb[0].mxu0
      %v344 = vpop.f32.mrb[0].mxu0
      %v345 = vadd.f32 %v248, %v344
      %v346 = vpop.f32.mrb[0].mxu0
      %347 = vmatprep.mubr.bf16.mxu0 0
      %348 = vmatmul.mubr.bf16.gmra.mrb[0].mxu0 %v282
      %v349 = vpop.f32.mrb[0].mxu0
      %v350 = vadd.f32 %v248, %v349
      %v351 = vpop.f32.mrb[0].mxu0
      %v352 = vpop.f32.mrb[0].mxu0
      %v353 = vadd.f32 %v248, %v352
      %v354 = vpop.f32.mrb[0].mxu0
      %355 = vmatprep.mubr.bf16.mxu0 0
      %356 = vmatmul.mubr.bf16.gmra.mrb[0].mxu0 %v285
      %v357 = vpop.f32.mrb[0].mxu0
      %v358 = vadd.f32 %v248, %v357
      %v359 = vpop.f32.mrb[0].mxu0
      %v360 = vpop.f32.mrb[0].mxu0
      %v361 = vadd.f32 %v248, %v360
      %v362 = vpop.f32.mrb[0].mxu0
      %363 = vmatprep.mubr.bf16.mxu0 0
      %364 = vmatmul.mubr.bf16.gmra.mrb[0].mxu0 %v288
      %v365 = vpop.f32.mrb[0].mxu0
      %v366 = vadd.f32 %v248, %v365
      %v367 = vpop.f32.mrb[0].mxu0
      %v368 = vpop.f32.mrb[0].mxu0
      %v369 = vadd.f32 %v248, %v368
      %v370 = vpop.f32.mrb[0].mxu0
      %371 = vmatprep.mubr.bf16.mxu0 0
      %372 = vmatmul.mubr.bf16.gmra.mrb[0].mxu0 %v291
      %v373 = vpop.f32.mrb[0].mxu0
      %v374 = vadd.f32 %v248, %v373
      %v375 = vpop.f32.mrb[0].mxu0
      %v376 = vpop.f32.mrb[0].mxu0
      %v377 = vadd.f32 %v248, %v376
      %v378 = vpop.f32.mrb[0].mxu0
      %379 = vmatprep.mubr.bf16.mxu0 0
      %380 = vmatmul.mubr.bf16.gmra.mrb[0].mxu0 %v294
      %v381 = vpop.f32.mrb[0].mxu0
      %v382 = vadd.f32 %v248, %v381
      %v383 = vpop.f32.mrb[0].mxu0
      %v384 = vpop.f32.mrb[0].mxu0
      %v385 = vadd.f32 %v248, %v384
      %v386 = vpop.f32.mrb[0].mxu0
      %387 = vmatprep.mubr.bf16.mxu0 0
      %388 = vmatmul.mubr.bf16.gmra.mrb[0].mxu0 %v297
      %v389 = vpop.f32.mrb[0].mxu0
      %v390 = vadd.f32 %v248, %v389
      %v391 = vpop.f32.mrb[0].mxu0
      %v392 = vpop.f32.mrb[0].mxu0
      %v393 = vadd.f32 %v248, %v392
      %v394 = vpop.f32.mrb[0].mxu0
      %395 = vdwg.mxu0
      %v396 = vpack.c.bf16 %v337, %v334
      %v397 = vpack.c.bf16 %v345, %v342
      %v398 = vpack.c.bf16 %v353, %v350
      %v399 = vpack.c.bf16 %v361, %v358
      %v400 = vpack.c.bf16 %v369, %v366
      %v401 = vpack.c.bf16 %v377, %v374
      %v402 = vpack.c.bf16 %v385, %v382
      %v403 = vpack.c.bf16 %v393, %v390
      %v412 = vunpack.c.l.b16 %v396
      %v413 = vunpack.c.h.b16 %v396
      %v414 = vunpack.c.l.b16 %v397
      %v415 = vunpack.c.h.b16 %v397
      %v416 = vunpack.c.l.b16 %v398
      %v417 = vunpack.c.h.b16 %v398
      %v418 = vunpack.c.l.b16 %v399
      %v419 = vunpack.c.h.b16 %v399
      %v420 = vunpack.c.l.b16 %v400
      %v421 = vunpack.c.h.b16 %v400
      %v422 = vunpack.c.l.b16 %v401
      %v423 = vunpack.c.h.b16 %v401
      %v424 = vunpack.c.l.b16 %v402
      %v425 = vunpack.c.h.b16 %v402
      %v426 = vunpack.c.l.b16 %v403
      %v427 = vunpack.c.h.b16 %v403
      %v428 = vpack.c.b16 %v412, %v412
      %v429 = vpack.c.b16 %v413, %v413
      %v430 = vpack.c.b16 %v414, %v414
      %v431 = vpack.c.b16 %v415, %v415
      %v432 = vpack.c.b16 %v416, %v416
      %v433 = vpack.c.b16 %v417, %v417
      %v434 = vpack.c.b16 %v418, %v418
      %v435 = vpack.c.b16 %v419, %v419
      %v436 = vpack.c.b16 %v420, %v420
      %v437 = vpack.c.b16 %v421, %v421
      %v438 = vpack.c.b16 %v422, %v422
      %v439 = vpack.c.b16 %v423, %v423
      %v440 = vpack.c.b16 %v424, %v424
      %v441 = vpack.c.b16 %v425, %v425
      %v442 = vpack.c.b16 %v426, %v426
      %v443 = vpack.c.b16 %v427, %v427
      %460 = vst [vmem:[%s208] sm:$0xf] %v428
      %461 = vst [vmem:[%s208 + $0x4] sm:$0xf] %v429
      %462 = vst [vmem:[%s208 + $0x8] sm:$0xf] %v430
      %463 = vst [vmem:[%s208 + $0xc] sm:$0xf] %v431
      %464 = vst [vmem:[%s208 + $0x10] sm:$0xf] %v432
      %465 = vst [vmem:[%s208 + $0x14] sm:$0xf] %v433
      %466 = vst [vmem:[%s208 + $0x18] sm:$0xf] %v434
      %467 = vst [vmem:[%s208 + $0x1c] sm:$0xf] %v435
      %468 = vst [vmem:[%s208 + $0x20] sm:$0xf] %v436
      %469 = vst [vmem:[%s208 + $0x24] sm:$0xf] %v437
      %470 = vst [vmem:[%s208 + $0x28] sm:$0xf] %v438
      %471 = vst [vmem:[%s208 + $0x2c] sm:$0xf] %v439
      %472 = vst [vmem:[%s208 + $0x30] sm:$0xf] %v440
      %473 = vst [vmem:[%s208 + $0x34] sm:$0xf] %v441
      %474 = vst [vmem:[%s208 + $0x38] sm:$0xf] %v442
      %475 = vst [vmem:[%s208 + $0x3c] sm:$0xf] %v443
      %s476 = smul.u32 16, %s19
      %p477 = scmp.lt.s32.totalorder %s18, 1
      %s478 = scalar_select %p477, %s18, 1
      %p479 = scmp.lt.s32.totalorder %s476, 31
      %s480 = scalar_select %p479, %s476, 31
      %s481 = smul.addr %s478, 32
      %s482 = sadd.s32 %s480, %s481
      %s483 = smul.addr %s482, 4
      %s484 = scalar_lea.vmem %s3, %s483
      // Predicated region
      $region33: #{self_attention.2} parent=31 // pred_check
        %p485 = pneg %p116
      $region34: #{self_attention.2} parent=31 // pred_check_branch
        %487 = sbr.rel (%p485) target = $region36
      $region35: #{self_attention.2} parent=31 // pred_region
        %s488 = smul.u32 16, %s19
      $region36: #{self_attention.2} parent=31 // pred_fallthru
        _
    $region32: #{self_attention.2} parent=5 // pred_fallthru
      _
    %p489 = scmp.le.s32.totalorder 2, %s9
    // Predicated region
    $region37: #{self_attention.2} parent=5 // pred_check
      %p490 = pneg %p489
    $region38: #{self_attention.2} parent=5 // pred_check_branch
      %492 = sbr.rel (%p490) target = $region40
    $region39: #{self_attention.2} parent=5 // pred_region
      %s493 = ssub.s32 %s9, 2
      // Predicated region
      $region41: #{self_attention.2} parent=39 // pred_check
        %p494 = pneg %p122
      $region42: #{self_attention.2} parent=39 // pred_check_branch
        %496 = sbr.rel (%p494) target = $region44
      $region43: #{self_attention.2} parent=39 // pred_region
        %s497 = smul.u32 16, %s21
        %p498 = scmp.lt.s32.totalorder %s20, 1
        %s499 = scalar_select %p498, %s20, 1
        %p500 = scmp.lt.s32.totalorder %s497, 31
        %s501 = scalar_select %p500, %s497, 31
        %s502 = smul.addr %s499, 32
        %s503 = sadd.s32 %s501, %s502
        %s504 = smul.addr %s503, 4
        %s505 = scalar_lea.vmem %s3, %s504
      $region44: #{self_attention.2} parent=39 // pred_fallthru
        _
    $region40: #{self_attention.2} parent=5 // pred_fallthru
      _
  $region6: #{self_attention.2} parent=0 // loop_footer
    %s13 = sadd.s32 1, %s9
  $region7: #{self_attention.2} parent=0 // loop_footer_branch
    %8 = sbr.rel target = $region3
  $region8: #{self_attention.2} parent=0 // loop_exit
    _

// kernel: self_attention.3
$region0: #{self_attention.3}
  #allocation0 [shape = 'u32[]', space=smem, size = 0x4, offset = 0x4, fixed_abs, tag = 'smem constant byte address 0x4 - core index']
  #allocation1 [shape = 'u32[144,128]{1,0:T(1,128)}', space=vmem, size = 0x12000, scoped, tag = 'internal scratch']
  #allocation2 [shape = 'f32[128,1]{1,0:T(8,128)}', space=vmem, size = 0x10000, scoped, tag = 'scratch operand']
  #allocation3 [shape = 'f32[128,1]{1,0:T(8,128)}', space=vmem, size = 0x10000, scoped, tag = 'scratch operand']
  #allocation4 [shape = 'f32[128,64]{1,0:T(8,128)}', space=vmem, size = 0x10000, scoped, tag = 'scratch operand']
  #allocation5 [shape = 'f32[1,1]{1,0:T(1,128)S(6)}', space=smem, size = 0x200, scoped, tag = 'scoped memory for self_attention.3']
  %s0 = inlined_call_operand.vmem [shape: bf16[2,256,128], index: 0, kind: input, shape index: {}, may-alias: {0,1}]
  %s1 = inlined_call_operand.vmem [shape: bf16[2,256,128], index: 1, kind: input, shape index: {}, may-alias: {0,1}]
  %s2 = inlined_call_operand.vmem [shape: f32[2,256,64], index: 2, kind: input, shape index: {}]
  %s3 = inlined_call_operand.<no memory space> [shape: f32[1,1], index: 3, kind: input, shape index: {}]
  %s4 = inlined_call_operand.hbm [shape: f32[2,256,64], index: 4, kind: output, shape index: {}]
  %s5 = sld [smem:[#allocation0]]
  $region57: #{self_attention.3} parent=0
    _
  %s7 = ssub.s32 1, %s5
  %s8 = scalar_select 0, %s7, %s5
  %9 = sst [smem:[#allocation5]] %s3
  $region1: #{self_attention.3} parent=0
    #allocation6 [shape = 'u8[131072]{0}', space=vmem, size = 0x20000, scoped, tag = 'output window, operand 0']
    #allocation7 [shape = 's32[2]{0}', space=sflag, size = 0x8, scoped, tag = 'scoped memory for self_attention.3']
    %10 = vsyncpa [#allocation7], 0
    %s11 = scalar_lea.sflag [#allocation7], 1
    %12 = vsyncpa %s11, 0
    loop: start=0, step=1, limit=10
    $region2: #{self_attention.3} parent=1 // loop_pre_header
      _
    $region3: #{self_attention.3} parent=1 // loop_header
      %s14 = sphi 0, %s18
      %p15 = scmp.ge.s32.totalorder %s14, 10
      %s21 = sphi 0, %s40
      %s22 = sphi 0, %s36
      %s23 = sphi 0, %s32
      %s24 = sphi 0, %s21
      %s25 = sphi 0, %s22
      %s26 = sphi 0, %s23
      %s27 = sphi 0, %s24
      %s28 = sphi 0, %s25
      %s29 = sphi 0, %s26
      %s45 = sphi 0, %s47
      %s48 = sphi 0, %s45
      %s49 = sphi 0, %s48
      %s65 = sphi 0, %s49
      %s73 = sphi 0, %s75
      %s76 = sphi 0, %s73
      %s77 = sphi 0, %s76
      %s93 = sphi 0, %s77
      %s101 = sphi 0, %s103
      %s104 = sphi 0, %s101
      %s105 = sphi 0, %s104
      %s121 = sphi 0, %s105
      %s125 = sphi 0, %s125
      %s127 = sphi 0, %s125
      %s128 = sphi 0, %s127
      %s142 = sphi 0, %s128
      %s150 = sphi 0, %s152
      %s153 = sphi 0, %s150
      %s154 = sphi 0, %s153
      %s170 = sphi 0, %s154
    $region4: #{self_attention.3} parent=1 // loop_header_branch
      %17 = sbr.rel (%p15) target = $region8
    $region5: #{self_attention.3} parent=1 // loop_body
      %s19 = ssub.s32 %s14, 1
      %s20 = ssub.s32 %s14, 2
      %s30 = sadd.s32 1, %s23
      %p31 = scmp.ge.s32.totalorder %s30, 2
      %s32 = scalar_select %p31, 0, %s30
      %s33 = sadd.s32 1, %s22
      %s34 = scalar_select %p31, %s33, %s22
      %p35 = scmp.ge.s32.totalorder %s34, 2
      %s36 = scalar_select %p35, 0, %s34
      %s37 = sadd.s32 1, %s21
      %s38 = scalar_select %p35, %s37, %s21
      %p39 = scmp.ge.s32.totalorder %s38, 2
      %s40 = scalar_select %p39, 0, %s38
      %s41 = ssub.s32 %s21, %s40
      %s42 = ssub.s32 %s22, %s36
      %s43 = sor.u32 %s41, %s42
      %p44 = scmp.eq.s32.totalorder %s43, 0
      %s46 = sadd.s32 %s45, 1
      %s47 = scalar_select %p44, %s45, %s46
      %p50 = pneg %p44
      %p51 = scmp.eq.s32.totalorder %s14, 7
      %p52 = por %p50, %p51
      %p53 = scmp.ne.s32.totalorder %s45, %s48
      %p54 = scmp.eq.s32.totalorder %s14, 0
      %p55 = por %p53, %p54
      %p56 = scmp.ne.s32.totalorder %s45, %s48
      %p57 = scmp.eq.s32.totalorder %s19, 7
      %p58 = por %p56, %p57
      %p59 = scmp.ne.s32.totalorder %s48, %s49
      %p60 = scmp.eq.s32.totalorder %s19, 0
      %p61 = por %p59, %p60
      %p62 = scmp.ne.s32.totalorder %s48, %s49
      %p63 = scmp.eq.s32.totalorder %s20, 7
      %p64 = por %p62, %p63
      %p66 = scmp.ne.s32.totalorder %s49, %s65
      %p67 = scmp.eq.s32.totalorder %s20, 0
      %p68 = por %p66, %p67
      %s69 = ssub.s32 %s21, %s40
      %s70 = ssub.s32 %s23, %s32
      %s71 = sor.u32 %s69, %s70
      %p72 = scmp.eq.s32.totalorder %s71, 0
      %s74 = sadd.s32 %s73, 1
      %s75 = scalar_select %p72, %s73, %s74
      %p78 = pneg %p72
      %p79 = scmp.eq.s32.totalorder %s14, 7
      %p80 = por %p78, %p79
      %p81 = scmp.ne.s32.totalorder %s73, %s76
      %p82 = scmp.eq.s32.totalorder %s14, 0
      %p83 = por %p81, %p82
      %p84 = scmp.ne.s32.totalorder %s73, %s76
      %p85 = scmp.eq.s32.totalorder %s19, 7
      %p86 = por %p84, %p85
      %p87 = scmp.ne.s32.totalorder %s76, %s77
      %p88 = scmp.eq.s32.totalorder %s19, 0
      %p89 = por %p87, %p88
      %p90 = scmp.ne.s32.totalorder %s76, %s77
      %p91 = scmp.eq.s32.totalorder %s20, 7
      %p92 = por %p90, %p91
      %p94 = scmp.ne.s32.totalorder %s77, %s93
      %p95 = scmp.eq.s32.totalorder %s20, 0
      %p96 = por %p94, %p95
      %s97 = ssub.s32 %s21, %s40
      %s98 = ssub.s32 %s22, %s36
      %s99 = sor.u32 %s97, %s98
      %p100 = scmp.eq.s32.totalorder %s99, 0
      %s102 = sadd.s32 %s101, 1
      %s103 = scalar_select %p100, %s101, %s102
      %p106 = pneg %p100
      %p107 = scmp.eq.s32.totalorder %s14, 7
      %p108 = por %p106, %p107
      %p109 = scmp.ne.s32.totalorder %s101, %s104
      %p110 = scmp.eq.s32.totalorder %s14, 0
      %p111 = por %p109, %p110
      %p112 = scmp.ne.s32.totalorder %s101, %s104
      %p113 = scmp.eq.s32.totalorder %s19, 7
      %p114 = por %p112, %p113
      %p115 = scmp.ne.s32.totalorder %s104, %s105
      %p116 = scmp.eq.s32.totalorder %s19, 0
      %p117 = por %p115, %p116
      %p118 = scmp.ne.s32.totalorder %s104, %s105
      %p119 = scmp.eq.s32.totalorder %s20, 7
      %p120 = por %p118, %p119
      %p122 = scmp.ne.s32.totalorder %s105, %s121
      %p123 = scmp.eq.s32.totalorder %s20, 0
      %p124 = por %p122, %p123
      %s126 = sadd.s32 %s125, 1
      %p129 = scmp.eq.s32.totalorder %s14, 7
      %p130 = scmp.ne.s32.totalorder %s125, %s127
      %p131 = scmp.eq.s32.totalorder %s14, 0
      %p132 = por %p130, %p131
      %p133 = scmp.ne.s32.totalorder %s125, %s127
      %p134 = scmp.eq.s32.totalorder %s19, 7
      %p135 = por %p133, %p134
      %p136 = scmp.ne.s32.totalorder %s127, %s128
      %p137 = scmp.eq.s32.totalorder %s19, 0
      %p138 = por %p136, %p137
      %p139 = scmp.ne.s32.totalorder %s127, %s128
      %p140 = scmp.eq.s32.totalorder %s20, 7
      %p141 = por %p139, %p140
      %p143 = scmp.ne.s32.totalorder %s128, %s142
      %p144 = scmp.eq.s32.totalorder %s20, 0
      %p145 = por %p143, %p144
      %s146 = ssub.s32 %s21, %s40
      %s147 = ssub.s32 %s22, %s36
      %s148 = sor.u32 %s146, %s147
      %p149 = scmp.eq.s32.totalorder %s148, 0
      %s151 = sadd.s32 %s150, 1
      %s152 = scalar_select %p149, %s150, %s151
      %p155 = pneg %p149
      %p156 = scmp.eq.s32.totalorder %s14, 7
      %p157 = por %p155, %p156
      %p158 = scmp.ne.s32.totalorder %s150, %s153
      %p159 = scmp.eq.s32.totalorder %s14, 0
      %p160 = por %p158, %p159
      %p161 = scmp.ne.s32.totalorder %s150, %s153
      %p162 = scmp.eq.s32.totalorder %s19, 7
      %p163 = por %p161, %p162
      %p164 = scmp.ne.s32.totalorder %s153, %s154
      %p165 = scmp.eq.s32.totalorder %s19, 0
      %p166 = por %p164, %p165
      %p167 = scmp.ne.s32.totalorder %s153, %s154
      %p168 = scmp.eq.s32.totalorder %s20, 7
      %p169 = por %p167, %p168
      %p171 = scmp.ne.s32.totalorder %s154, %s170
      %p172 = scmp.eq.s32.totalorder %s20, 0
      %p173 = por %p171, %p172
      %p174 = scmp.le.s32.totalorder 1, %s14
      %p175 = scmp.lt.s32.totalorder %s14, 9
      %p176 = pnand %p174, %p175
      %p177 = pneg %p176
      // Predicated region
      $region9: #{self_attention.3} parent=5 // pred_check
        _
      $region10: #{self_attention.3} parent=5 // pred_check_branch
        %179 = sbr.rel (%p176) target = $region12
      $region11: #{self_attention.3} parent=5 // pred_region
        %s180 = ssub.s32 %s14, 1
        // Predicated region
        $region13: #{self_attention.3} parent=11 // pred_check
          %p181 = pneg %p138
        $region14: #{self_attention.3} parent=11 // pred_check_branch
          %183 = sbr.rel (%p181) target = $region16
        $region15: #{self_attention.3} parent=11 // pred_region
          _
        $region16: #{self_attention.3} parent=11 // pred_fallthru
          _
      $region12: #{self_attention.3} parent=5 // pred_fallthru
        _
      %p184 = scmp.lt.s32.totalorder %s14, 8
      // Predicated region
      $region17: #{self_attention.3} parent=5 // pred_check
        %p185 = pneg %p184
      $region18: #{self_attention.3} parent=5 // pred_check_branch
        %187 = sbr.rel (%p185) target = $region20
      $region19: #{self_attention.3} parent=5 // pred_region
        // Predicated region
        $region21: #{self_attention.3} parent=19 // pred_check
          %p188 = pneg %p55
        $region22: #{self_attention.3} parent=19 // pred_check_branch
          %190 = sbr.rel (%p188) target = $region24
        $region23: #{self_attention.3} parent=19 // pred_region
          %s191 = smul.u32 16, %s22
          %p192 = scmp.lt.s32.totalorder %s21, 1
          %s193 = scalar_select %p192, %s21, 1
          %p194 = scmp.lt.s32.totalorder %s191, 31
          %s195 = scalar_select %p194, %s191, 31
          %s196 = smul.addr %s193, 32
          %s197 = sadd.s32 %s195, %s196
          %s198 = smul.addr %s197, 4
          %s199 = scalar_lea.vmem %s0, %s198
          %s200 = smul.u32 16, %s22
        $region24: #{self_attention.3} parent=19 // pred_fallthru
          _
        // Predicated region
        $region25: #{self_attention.3} parent=19 // pred_check
          %p201 = pneg %p83
        $region26: #{self_attention.3} parent=19 // pred_check_branch
          %203 = sbr.rel (%p201) target = $region28
        $region27: #{self_attention.3} parent=19 // pred_region
          %s204 = smul.u32 16, %s23
          %p205 = scmp.lt.s32.totalorder %s21, 1
          %s206 = scalar_select %p205, %s21, 1
          %p207 = scmp.lt.s32.totalorder %s204, 31
          %s208 = scalar_select %p207, %s204, 31
          %s209 = smul.addr %s206, 32
          %s210 = sadd.s32 %s208, %s209
          %s211 = smul.addr %s210, 4
          %s212 = scalar_lea.vmem %s1, %s211
          %s213 = smul.u32 16, %s23
        $region28: #{self_attention.3} parent=19 // pred_fallthru
          _
        // Predicated region
        $region29: #{self_attention.3} parent=19 // pred_check
          %p214 = pneg %p111
        $region30: #{self_attention.3} parent=19 // pred_check_branch
          %216 = sbr.rel (%p214) target = $region32
        $region31: #{self_attention.3} parent=19 // pred_region
          %s217 = smul.u32 16, %s22
          %p218 = scmp.lt.s32.totalorder %s21, 1
          %s219 = scalar_select %p218, %s21, 1
          %p220 = scmp.lt.s32.totalorder %s217, 31
          %s221 = scalar_select %p220, %s217, 31
          %s222 = smul.addr %s219, 32
          %s223 = sadd.s32 %s221, %s222
          %s224 = smul.addr %s223, 8
          %s225 = scalar_lea.vmem %s2, %s224
          %s226 = smul.u32 16, %s22
        $region32: #{self_attention.3} parent=19 // pred_fallthru
          _
      $region20: #{self_attention.3} parent=5 // pred_fallthru
        _
      %p227 = scmp.le.s32.totalorder 1, %s14
      %p228 = scmp.lt.s32.totalorder %s14, 9
      %p229 = pnand %p227, %p228
      %p230 = pneg %p229
      // Predicated region
      $region33: #{self_attention.3} parent=5 // pred_check
        _
      $region34: #{self_attention.3} parent=5 // pred_check_branch
        %232 = sbr.rel (%p229) target = $region36
      $region35: #{self_attention.3} parent=5 // pred_region
        %s233 = ssub.s32 %s14, 1
        %s234 = smul.u32 16, %s25
        %p235 = scmp.lt.s32.totalorder %s24, 1
        %s236 = scalar_select %p235, %s24, 1
        %p237 = scmp.lt.s32.totalorder %s234, 31
        %s238 = scalar_select %p237, %s234, 31
        %s239 = smul.addr %s236, 32
        %s240 = sadd.s32 %s238, %s239
        %s241 = smul.addr %s240, 4
        %s242 = scalar_lea.vmem %s0, %s241
        %p243 = pneg %p61
        %p244 = pneg %p58
        %s245 = smul.u32 16, %s26
        %p246 = scmp.lt.s32.totalorder %s24, 1
        %s247 = scalar_select %p246, %s24, 1
        %p248 = scmp.lt.s32.totalorder %s245, 31
        %s249 = scalar_select %p248, %s245, 31
        %s250 = smul.addr %s247, 32
        %s251 = sadd.s32 %s249, %s250
        %s252 = smul.addr %s251, 4
        %s253 = scalar_lea.vmem %s1, %s252
        %p254 = pneg %p89
        %p255 = pneg %p86
        %s256 = smul.u32 16, %s25
        %p257 = scmp.lt.s32.totalorder %s24, 1
        %s258 = scalar_select %p257, %s24, 1
        %p259 = scmp.lt.s32.totalorder %s256, 31
        %s260 = scalar_select %p259, %s256, 31
        %s261 = smul.addr %s258, 32
        %s262 = sadd.s32 %s260, %s261
        %s263 = smul.addr %s262, 8
        %s264 = scalar_lea.vmem %s2, %s263
        %p265 = pneg %p117
        %p266 = pneg %p114
        %p267 = pneg %p138
        %p268 = pneg %p135
        %p269 = pneg %p166
        %p270 = pneg %p163
        %s271 = sand.u32 %s153, 1
        %s272 = scalar_lea.sflag [#allocation7], %s271
        %s273 = sand.u32 %s153, 1
        %s274 = smul.addr %s273, 128
        %s275 = scalar_lea.vmem [#allocation6], %s274
        %s276 = smul.u32 16, %s25
        %p277 = scmp.lt.s32.totalorder %s24, 1
        %s278 = scalar_select %p277, %s24, 1
        %p279 = scmp.lt.s32.totalorder %s276, 31
        %s280 = scalar_select %p279, %s276, 31
        %s281 = smul.addr %s278, 32
        %s282 = sadd.s32 %s280, %s281
        %s283 = smul.addr %s282, 4
        %s284 = scalar_lea.vmem %s0, %s283
        %s285 = smul.u32 16, %s25
        %s286 = smul.u32 16, %s26
        %p287 = scmp.lt.s32.totalorder %s24, 1
        %s288 = scalar_select %p287, %s24, 1
        %p289 = scmp.lt.s32.totalorder %s286, 31
        %s290 = scalar_select %p289, %s286, 31
        %s291 = smul.addr %s288, 32
        %s292 = sadd.s32 %s290, %s291
        %s293 = smul.addr %s292, 4
        %s294 = scalar_lea.vmem %s1, %s293
        %s295 = smul.u32 16, %s26
        %s296 = smul.u32 16, %s25
        %p297 = scmp.lt.s32.totalorder %s24, 1
        %s298 = scalar_select %p297, %s24, 1
        %p299 = scmp.lt.s32.totalorder %s296, 31
        %s300 = scalar_select %p299, %s296, 31
        %s301 = smul.addr %s298, 32
        %s302 = sadd.s32 %s300, %s301
        %s303 = smul.addr %s302, 8
        %s304 = scalar_lea.vmem %s2, %s303
        %s305 = smul.u32 16, %s25
        %s306 = smul.u32 16, %s25
        %p308 = scmp.eq.s32.totalorder %s26, 0
        // Predicated region
        $region37: #{self_attention.3} parent=35 // pred_check
          %p309 = pneg %p308
        $region38: #{self_attention.3} parent=35 // pred_check_branch
          %311 = sbr.rel (%p309) target = $region40
        $region39: #{self_attention.3} parent=35 // pred_region
          %vm312 = vcmask 7168
          %313 = vst.msk [vmem:[#allocation2] sm:$0xff] %vm312, -inf
          %314 = vst.msk [vmem:[#allocation2 + $0x8] sm:$0xff] %vm312, -inf
          %315 = vst.msk [vmem:[#allocation2 + $0x10] sm:$0xff] %vm312, -inf
          %316 = vst.msk [vmem:[#allocation2 + $0x18] sm:$0xff] %vm312, -inf
          %317 = vst.msk [vmem:[#allocation2 + $0x20] sm:$0xff] %vm312, -inf
          %318 = vst.msk [vmem:[#allocation2 + $0x28] sm:$0xff] %vm312, -inf
          %319 = vst.msk [vmem:[#allocation2 + $0x30] sm:$0xff] %vm312, -inf
          %320 = vst.msk [vmem:[#allocation2 + $0x38] sm:$0xff] %vm312, -inf
          %321 = vst.msk [vmem:[#allocation2 + $0x40] sm:$0xff] %vm312, -inf
          %322 = vst.msk [vmem:[#allocation2 + $0x48] sm:$0xff] %vm312, -inf
          %323 = vst.msk [vmem:[#allocation2 + $0x50] sm:$0xff] %vm312, -inf
          %324 = vst.msk [vmem:[#allocation2 + $0x58] sm:$0xff] %vm312, -inf
          %325 = vst.msk [vmem:[#allocation2 + $0x60] sm:$0xff] %vm312, -inf
          %326 = vst.msk [vmem:[#allocation2 + $0x68] sm:$0xff] %vm312, -inf
          %327 = vst.msk [vmem:[#allocation2 + $0x70] sm:$0xff] %vm312, -inf
          %328 = vst.msk [vmem:[#allocation2 + $0x78] sm:$0xff] %vm312, -inf
          %329 = vst.msk [vmem:[#allocation3] sm:$0xff] %vm312, 0.0
          %330 = vst.msk [vmem:[#allocation3 + $0x8] sm:$0xff] %vm312, 0.0
          %331 = vst.msk [vmem:[#allocation3 + $0x10] sm:$0xff] %vm312, 0.0
          %332 = vst.msk [vmem:[#allocation3 + $0x18] sm:$0xff] %vm312, 0.0
          %333 = vst.msk [vmem:[#allocation3 + $0x20] sm:$0xff] %vm312, 0.0
          %334 = vst.msk [vmem:[#allocation3 + $0x28] sm:$0xff] %vm312, 0.0
          %335 = vst.msk [vmem:[#allocation3 + $0x30] sm:$0xff] %vm312, 0.0
          %336 = vst.msk [vmem:[#allocation3 + $0x38] sm:$0xff] %vm312, 0.0
          %337 = vst.msk [vmem:[#allocation3 + $0x40] sm:$0xff] %vm312, 0.0
          %338 = vst.msk [vmem:[#allocation3 + $0x48] sm:$0xff] %vm312, 0.0
          %339 = vst.msk [vmem:[#allocation3 + $0x50] sm:$0xff] %vm312, 0.0
          %340 = vst.msk [vmem:[#allocation3 + $0x58] sm:$0xff] %vm312, 0.0
          %341 = vst.msk [vmem:[#allocation3 + $0x60] sm:$0xff] %vm312, 0.0
          %342 = vst.msk [vmem:[#allocation3 + $0x68] sm:$0xff] %vm312, 0.0
          %343 = vst.msk [vmem:[#allocation3 + $0x70] sm:$0xff] %vm312, 0.0
          %344 = vst.msk [vmem:[#allocation3 + $0x78] sm:$0xff] %vm312, 0.0
          %vm345 = vcmask 523264
          %346 = vst.msk [vmem:[#allocation4] sm:$0xff] %vm345, 0.0
          %347 = vst.msk [vmem:[#allocation4 + $0x8] sm:$0xff] %vm345, 0.0
          %348 = vst.msk [vmem:[#allocation4 + $0x10] sm:$0xff] %vm345, 0.0
          %349 = vst.msk [vmem:[#allocation4 + $0x18] sm:$0xff] %vm345, 0.0
          %350 = vst.msk [vmem:[#allocation4 + $0x20] sm:$0xff] %vm345, 0.0
          %351 = vst.msk [vmem:[#allocation4 + $0x28] sm:$0xff] %vm345, 0.0
          %352 = vst.msk [vmem:[#allocation4 + $0x30] sm:$0xff] %vm345, 0.0
          %353 = vst.msk [vmem:[#allocation4 + $0x38] sm:$0xff] %vm345, 0.0
          %354 = vst.msk [vmem:[#allocation4 + $0x40] sm:$0xff] %vm345, 0.0
          %355 = vst.msk [vmem:[#allocation4 + $0x48] sm:$0xff] %vm345, 0.0
          %356 = vst.msk [vmem:[#allocation4 + $0x50] sm:$0xff] %vm345, 0.0
          %357 = vst.msk [vmem:[#allocation4 + $0x58] sm:$0xff] %vm345, 0.0
          %358 = vst.msk [vmem:[#allocation4 + $0x60] sm:$0xff] %vm345, 0.0
          %359 = vst.msk [vmem:[#allocation4 + $0x68] sm:$0xff] %vm345, 0.0
          %360 = vst.msk [vmem:[#allocation4 + $0x70] sm:$0xff] %vm345, 0.0
          %361 = vst.msk [vmem:[#allocation4 + $0x78] sm:$0xff] %vm345, 0.0
        $region40: #{self_attention.3} parent=35 // pred_fallthru
          _
        %v362 = vld [vmem:[%s284] sm:$0xf]
        %v363 = vld [vmem:[%s284 + $0x4] sm:$0xf]
        %v364 = vld [vmem:[%s284 + $0x8] sm:$0xf]
        %v365 = vld [vmem:[%s284 + $0xc] sm:$0xf]
        %v366 = vld [vmem:[%s284 + $0x10] sm:$0xf]
        %v367 = vld [vmem:[%s284 + $0x14] sm:$0xf]
        %v368 = vld [vmem:[%s284 + $0x18] sm:$0xf]
        %v369 = vld [vmem:[%s284 + $0x1c] sm:$0xf]
        %v370 = vld [vmem:[%s284 + $0x20] sm:$0xf]
        %v371 = vld [vmem:[%s284 + $0x24] sm:$0xf]
        %v372 = vld [vmem:[%s284 + $0x28] sm:$0xf]
        %v373 = vld [vmem:[%s284 + $0x2c] sm:$0xf]
        %v374 = vld [vmem:[%s284 + $0x30] sm:$0xf]
        %v375 = vld [vmem:[%s284 + $0x34] sm:$0xf]
        %v376 = vld [vmem:[%s284 + $0x38] sm:$0xf]
        %v377 = vld [vmem:[%s284 + $0x3c] sm:$0xf]
        %v378 = vld [vmem:[%s294] sm:$0xf]
        %v379 = vld [vmem:[%s294 + $0x4] sm:$0xf]
        %v380 = vld [vmem:[%s294 + $0x8] sm:$0xf]
        %v381 = vld [vmem:[%s294 + $0xc] sm:$0xf]
        %v382 = vld [vmem:[%s294 + $0x10] sm:$0xf]
        %v383 = vld [vmem:[%s294 + $0x14] sm:$0xf]
        %v384 = vld [vmem:[%s294 + $0x18] sm:$0xf]
        %v385 = vld [vmem:[%s294 + $0x1c] sm:$0xf]
        %v386 = vld [vmem:[%s294 + $0x20] sm:$0xf]
        %v387 = vld [vmem:[%s294 + $0x24] sm:$0xf]
        %v388 = vld [vmem:[%s294 + $0x28] sm:$0xf]
        %v389 = vld [vmem:[%s294 + $0x2c] sm:$0xf]
        %v390 = vld [vmem:[%s294 + $0x30] sm:$0xf]
        %v391 = vld [vmem:[%s294 + $0x34] sm:$0xf]
        %v392 = vld [vmem:[%s294 + $0x38] sm:$0xf]
        %v393 = vld [vmem:[%s294 + $0x3c] sm:$0xf]
        %v410 = vunpack.c.l.b16 %v362
        %v411 = vunpack.c.l.b16 %v363
        %v412 = vunpack.c.l.b16 %v364
        %v413 = vunpack.c.l.b16 %v365
        %v414 = vunpack.c.l.b16 %v366
        %v415 = vunpack.c.l.b16 %v367
        %v416 = vunpack.c.l.b16 %v368
        %v417 = vunpack.c.l.b16 %v369
        %v418 = vunpack.c.l.b16 %v370
        %v419 = vunpack.c.l.b16 %v371
        %v420 = vunpack.c.l.b16 %v372
        %v421 = vunpack.c.l.b16 %v373
        %v422 = vunpack.c.l.b16 %v374
        %v423 = vunpack.c.l.b16 %v375
        %v424 = vunpack.c.l.b16 %v376
        %v425 = vunpack.c.l.b16 %v377
        %v426 = vpack.c.b16 %v411, %v410
        %v427 = vpack.c.b16 %v413, %v412
        %v428 = vpack.c.b16 %v415, %v414
        %v429 = vpack.c.b16 %v417, %v416
        %v430 = vpack.c.b16 %v419, %v418
        %v431 = vpack.c.b16 %v421, %v420
        %v432 = vpack.c.b16 %v423, %v422
        %v433 = vpack.c.b16 %v425, %v424
        %434 = vrot.lane.b32.xlu0 %v426, 64
        %v435 = vpop.permute.xlu0 %434
        %436 = vrot.lane.b32.xlu0 %v427, 64
        %v437 = vpop.permute.xlu0 %436
        %438 = vrot.lane.b32.xlu0 %v428, 64
        %v439 = vpop.permute.xlu0 %438
        %440 = vrot.lane.b32.xlu0 %v429, 64
        %v441 = vpop.permute.xlu0 %440
        %442 = vrot.lane.b32.xlu0 %v430, 64
        %v443 = vpop.permute.xlu0 %442
        %444 = vrot.lane.b32.xlu0 %v431, 64
        %v445 = vpop.permute.xlu0 %444
        %446 = vrot.lane.b32.xlu0 %v432, 64
        %v447 = vpop.permute.xlu0 %446
        %448 = vrot.lane.b32.xlu0 %v433, 64
        %v449 = vpop.permute.xlu0 %448
        %v466 = vunpack.c.l.b16 %v378
        %v467 = vunpack.c.l.b16 %v379
        %v468 = vunpack.c.l.b16 %v380
        %v469 = vunpack.c.l.b16 %v381
        %v470 = vunpack.c.l.b16 %v382
        %v471 = vunpack.c.l.b16 %v383
        %v472 = vunpack.c.l.b16 %v384
        %v473 = vunpack.c.l.b16 %v385
        %v474 = vunpack.c.l.b16 %v386
        %v475 = vunpack.c.l.b16 %v387
        %v476 = vunpack.c.l.b16 %v388
        %v477 = vunpack.c.l.b16 %v389
        %v478 = vunpack.c.l.b16 %v390
        %v479 = vunpack.c.l.b16 %v391
        %v480 = vunpack.c.l.b16 %v392
        %v481 = vunpack.c.l.b16 %v393
        %v482 = vpack.c.b16 %v467, %v466
        %v483 = vpack.c.b16 %v469, %v468
        %v484 = vpack.c.b16 %v471, %v470
        %v485 = vpack.c.b16 %v473, %v472
        %v486 = vpack.c.b16 %v475, %v474
        %v487 = vpack.c.b16 %v477, %v476
        %v488 = vpack.c.b16 %v479, %v478
        %v489 = vpack.c.b16 %v481, %v480
        %490 = vrot.lane.b32.xlu0 %v482, 56
        %v491 = vpop.permute.xlu0 %490
        %492 = vrot.lane.b32.xlu0 %v483, 56
        %v493 = vpop.permute.xlu0 %492
        %494 = vrot.lane.b32.xlu0 %v484, 56
        %v495 = vpop.permute.xlu0 %494
        %496 = vrot.lane.b32.xlu0 %v485, 56
        %v497 = vpop.permute.xlu0 %496
        %498 = vrot.lane.b32.xlu0 %v486, 56
        %v499 = vpop.permute.xlu0 %498
        %500 = vrot.lane.b32.xlu0 %v487, 56
        %v501 = vpop.permute.xlu0 %500
        %502 = vrot.lane.b32.xlu0 %v488, 56
        %v503 = vpop.permute.xlu0 %502
        %504 = vrot.lane.b32.xlu0 %v489, 56
        %v505 = vpop.permute.xlu0 %504
        %vm506 = vcmask 64512
        %v508 = vsel %vm506, %v435, 0
        %v511 = vsel %vm506, %v437, 0
        %v514 = vsel %vm506, %v439, 0
        %v517 = vsel %vm506, %v441, 0
        %v520 = vsel %vm506, %v443, 0
        %v523 = vsel %vm506, %v445, 0
        %v526 = vsel %vm506, %v447, 0
        %v529 = vsel %vm506, %v449, 0
        %v532 = vsel %vm506, %v491, 0
        %v535 = vsel %vm506, %v493, 0
        %v538 = vsel %vm506, %v495, 0
        %v541 = vsel %vm506, %v497, 0
        %v544 = vsel %vm506, %v499, 0
        %v547 = vsel %vm506, %v501, 0
        %v550 = vsel %vm506, %v503, 0
        %v553 = vsel %vm506, %v505, 0
        %555 = vmatprep.subr.bf16.mxu0 0
        %556 = vmatpush1.bf16.xpose.msra.mxu0 %v532
        %557 = vmatprep.subr.bf16.mxu0 0
        %558 = vmatpush1.bf16.xpose.msra.mxu0 %v535
        %559 = vmatprep.subr.bf16.mxu0 0
        %560 = vmatpush1.bf16.xpose.msra.mxu0 %v538
        %561 = vmatprep.subr.bf16.mxu0 0
        %562 = vmatpush1.bf16.xpose.msra.mxu0 %v541
        %563 = vmatprep.subr.bf16.mxu0 0
        %564 = vmatpush1.bf16.xpose.msra.mxu0 %v544
        %565 = vmatprep.subr.bf16.mxu0 0
        %566 = vmatpush1.bf16.xpose.msra.mxu0 %v547
        %567 = vmatprep.subr.bf16.mxu0 0
        %568 = vmatpush1.bf16.xpose.msra.mxu0 %v550
        %569 = vmatprep.subr.bf16.mxu0 0
        %570 = vmatpush1.bf16.xpose.msra.mxu0 %v553
        %571 = vmatprep.subr.bf16.mxu0 0
        %572 = vmatpush1.bf16.xpose.msra.mxu0 0
        %573 = vmatprep.subr.bf16.mxu0 0
        %574 = vmatpush1.bf16.xpose.msra.mxu0 0
        %575 = vmatprep.subr.bf16.mxu0 0
        %576 = vmatpush1.bf16.xpose.msra.mxu0 0
        %577 = vmatprep.subr.bf16.mxu0 0
        %578 = vmatpush1.bf16.xpose.msra.mxu0 0
        %579 = vmatprep.subr.bf16.mxu0 0
        %580 = vmatpush1.bf16.xpose.msra.mxu0 0
        %581 = vmatprep.subr.bf16.mxu0 0
        %582 = vmatpush1.bf16.xpose.msra.mxu0 0
        %583 = vmatprep.subr.bf16.mxu0 0
        %584 = vmatpush1.bf16.xpose.msra.mxu0 0
        %585 = vmatprep.subr.bf16.mxu0 0
        %586 = vmatpush1.bf16.xpose.msra.mxu0 0
        %587 = vmatprep.mubr.bf16.mxu0 0
        %588 = vmatmul.mubr.bf16.gmra.mrb[0].mxu0 %v508
        %v589 = vpop.f32.mrb[0].mxu0
        %v590 = vadd.f32 0.0, %v589
        %v591 = vpop.f32.mrb[0].mxu0
        %v592 = vpop.f32.mrb[0].mxu0
        %v593 = vadd.f32 0.0, %v592
        %v594 = vpop.f32.mrb[0].mxu0
        %595 = vmatprep.mubr.bf16.mxu0 0
        %596 = vmatmul.mubr.bf16.gmra.mrb[0].mxu0 %v511
        %v597 = vpop.f32.mrb[0].mxu0
        %v598 = vadd.f32 0.0, %v597
        %v599 = vpop.f32.mrb[0].mxu0
        %v600 = vpop.f32.mrb[0].mxu0
        %v601 = vadd.f32 0.0, %v600
        %v602 = vpop.f32.mrb[0].mxu0
        %603 = vmatprep.mubr.bf16.mxu0 0
        %604 = vmatmul.mubr.bf16.gmra.mrb[0].mxu0 %v514
        %v605 = vpop.f32.mrb[0].mxu0
        %v606 = vadd.f32 0.0, %v605
        %v607 = vpop.f32.mrb[0].mxu0
        %v608 = vpop.f32.mrb[0].mxu0
        %v609 = vadd.f32 0.0, %v608
        %v610 = vpop.f32.mrb[0].mxu0
        %611 = vmatprep.mubr.bf16.mxu0 0
        %612 = vmatmul.mubr.bf16.gmra.mrb[0].mxu0 %v517
        %v613 = vpop.f32.mrb[0].mxu0
        %v614 = vadd.f32 0.0, %v613
        %v615 = vpop.f32.mrb[0].mxu0
        %v616 = vpop.f32.mrb[0].mxu0
        %v617 = vadd.f32 0.0, %v616
        %v618 = vpop.f32.mrb[0].mxu0
        %619 = vmatprep.mubr.bf16.mxu0 0
        %620 = vmatmul.mubr.bf16.gmra.mrb[0].mxu0 %v520
        %v621 = vpop.f32.mrb[0].mxu0
        %v622 = vadd.f32 0.0, %v621
        %v623 = vpop.f32.mrb[0].mxu0
        %v624 = vpop.f32.mrb[0].mxu0
        %v625 = vadd.f32 0.0, %v624
        %v626 = vpop.f32.mrb[0].mxu0
        %627 = vmatprep.mubr.bf16.mxu0 0
        %628 = vmatmul.mubr.bf16.gmra.mrb[0].mxu0 %v523
        %v629 = vpop.f32.mrb[0].mxu0
        %v630 = vadd.f32 0.0, %v629
        %v631 = vpop.f32.mrb[0].mxu0
        %v632 = vpop.f32.mrb[0].mxu0
        %v633 = vadd.f32 0.0, %v632
        %v634 = vpop.f32.mrb[0].mxu0
        %635 = vmatprep.mubr.bf16.mxu0 0
        %636 = vmatmul.mubr.bf16.gmra.mrb[0].mxu0 %v526
        %v637 = vpop.f32.mrb[0].mxu0
        %v638 = vadd.f32 0.0, %v637
        %v639 = vpop.f32.mrb[0].mxu0
        %v640 = vpop.f32.mrb[0].mxu0
        %v641 = vadd.f32 0.0, %v640
        %v642 = vpop.f32.mrb[0].mxu0
        %643 = vmatprep.mubr.bf16.mxu0 0
        %644 = vmatmul.mubr.bf16.gmra.mrb[0].mxu0 %v529
        %v645 = vpop.f32.mrb[0].mxu0
        %v646 = vadd.f32 0.0, %v645
        %v647 = vpop.f32.mrb[0].mxu0
        %v648 = vpop.f32.mrb[0].mxu0
        %v649 = vadd.f32 0.0, %v648
        %v650 = vpop.f32.mrb[0].mxu0
        %651 = vdwg.mxu0
        %v652 = vld [vmem:[#allocation2] sm:$0xff]
        %v653 = vld [vmem:[#allocation2 + $0x8] sm:$0xff]
        %v654 = vld [vmem:[#allocation2 + $0x10] sm:$0xff]
        %v655 = vld [vmem:[#allocation2 + $0x18] sm:$0xff]
        %v656 = vld [vmem:[#allocation2 + $0x20] sm:$0xff]
        %v657 = vld [vmem:[#allocation2 + $0x28] sm:$0xff]
        %v658 = vld [vmem:[#allocation2 + $0x30] sm:$0xff]
        %v659 = vld [vmem:[#allocation2 + $0x38] sm:$0xff]
        %v660 = vld [vmem:[#allocation2 + $0x40] sm:$0xff]
        %v661 = vld [vmem:[#allocation2 + $0x48] sm:$0xff]
        %v662 = vld [vmem:[#allocation2 + $0x50] sm:$0xff]
        %v663 = vld [vmem:[#allocation2 + $0x58] sm:$0xff]
        %v664 = vld [vmem:[#allocation2 + $0x60] sm:$0xff]
        %v665 = vld [vmem:[#allocation2 + $0x68] sm:$0xff]
        %v666 = vld [vmem:[#allocation2 + $0x70] sm:$0xff]
        %v667 = vld [vmem:[#allocation2 + $0x78] sm:$0xff]
        %668 = vmax.xlane.f32.xlu0 %v590
        %v669 = vpop.xlane.xlu0 %668
        %670 = vmax.xlane.f32.xlu0 %v593
        %v671 = vpop.xlane.xlu0 %670
        %672 = vmax.xlane.f32.xlu0 %v598
        %v673 = vpop.xlane.xlu0 %672
        %674 = vmax.xlane.f32.xlu0 %v601
        %v675 = vpop.xlane.xlu0 %674
        %676 = vmax.xlane.f32.xlu0 %v606
        %v677 = vpop.xlane.xlu0 %676
        %678 = vmax.xlane.f32.xlu0 %v609
        %v679 = vpop.xlane.xlu0 %678
        %680 = vmax.xlane.f32.xlu0 %v614
        %v681 = vpop.xlane.xlu0 %680
        %682 = vmax.xlane.f32.xlu0 %v617
        %v683 = vpop.xlane.xlu0 %682
        %684 = vmax.xlane.f32.xlu0 %v622
        %v685 = vpop.xlane.xlu0 %684
        %686 = vmax.xlane.f32.xlu0 %v625
        %v687 = vpop.xlane.xlu0 %686
        %688 = vmax.xlane.f32.xlu0 %v630
        %v689 = vpop.xlane.xlu0 %688
        %690 = vmax.xlane.f32.xlu0 %v633
        %v691 = vpop.xlane.xlu0 %690
        %692 = vmax.xlane.f32.xlu0 %v638
        %v693 = vpop.xlane.xlu0 %692
        %694 = vmax.xlane.f32.xlu0 %v641
        %v695 = vpop.xlane.xlu0 %694
        %696 = vmax.xlane.f32.xlu0 %v646
        %v697 = vpop.xlane.xlu0 %696
        %698 = vmax.xlane.f32.xlu0 %v649
        %v699 = vpop.xlane.xlu0 %698
        %v700 = vmax.f32 %v652, %v669
        %v701 = vmax.f32 %v653, %v671
        %v702 = vmax.f32 %v654, %v673
        %v703 = vmax.f32 %v655, %v675
        %v704 = vmax.f32 %v656, %v677
        %v705 = vmax.f32 %v657, %v679
        %v706 = vmax.f32 %v658, %v681
        %v707 = vmax.f32 %v659, %v683
        %v708 = vmax.f32 %v660, %v685
        %v709 = vmax.f32 %v661, %v687
        %v710 = vmax.f32 %v662, %v689
        %v711 = vmax.f32 %v663, %v691
        %v712 = vmax.f32 %v664, %v693
        %v713 = vmax.f32 %v665, %v695
        %v714 = vmax.f32 %v666, %v697
        %v715 = vmax.f32 %v667, %v699
        %v716 = vsub.f32 %v652, %v700
        %v717 = vsub.f32 %v653, %v701
        %v718 = vsub.f32 %v654, %v702
        %v719 = vsub.f32 %v655, %v703
        %v720 = vsub.f32 %v656, %v704
        %v721 = vsub.f32 %v657, %v705
        %v722 = vsub.f32 %v658, %v706
        %v723 = vsub.f32 %v659, %v707
        %v724 = vsub.f32 %v660, %v708
        %v725 = vsub.f32 %v661, %v709
        %v726 = vsub.f32 %v662, %v710
        %v727 = vsub.f32 %v663, %v711
        %v728 = vsub.f32 %v664, %v712
        %v729 = vsub.f32 %v665, %v713
        %v730 = vsub.f32 %v666, %v714
        %v731 = vsub.f32 %v667, %v715
        %v732 = vmul.f32 %v716, 1.442695
        %v733 = vpow.pop %v732
        %v734 = vmul.f32 %v717, 1.442695
        %v735 = vpow.pop %v734
        %v736 = vmul.f32 %v718, 1.442695
        %v737 = vpow.pop %v736
        %v738 = vmul.f32 %v719, 1.442695
        %v739 = vpow.pop %v738
        %v740 = vmul.f32 %v720, 1.442695
        %v741 = vpow.pop %v740
        %v742 = vmul.f32 %v721, 1.442695
        %v743 = vpow.pop %v742
        %v744 = vmul.f32 %v722, 1.442695
        %v745 = vpow.pop %v744
        %v746 = vmul.f32 %v723, 1.442695
        %v747 = vpow.pop %v746
        %v748 = vmul.f32 %v724, 1.442695
        %v749 = vpow.pop %v748
        %v750 = vmul.f32 %v725, 1.442695
        %v751 = vpow.pop %v750
        %v752 = vmul.f32 %v726, 1.442695
        %v753 = vpow.pop %v752
        %v754 = vmul.f32 %v727, 1.442695
        %v755 = vpow.pop %v754
        %v756 = vmul.f32 %v728, 1.442695
        %v757 = vpow.pop %v756
        %v758 = vmul.f32 %v729, 1.442695
        %v759 = vpow.pop %v758
        %v760 = vmul.f32 %v730, 1.442695
        %v761 = vpow.pop %v760
        %v762 = vmul.f32 %v731, 1.442695
        %v763 = vpow.pop %v762
        %765 = vset.pattern.permute.xlu0 0
        %766 = vperm.xlu0 %765, %v700
        %v767 = vpop.permute.xlu0 %766
        %770 = vset.pattern.permute.xlu0 0
        %771 = vperm.xlu0 %770, %v701
        %v772 = vpop.permute.xlu0 %771
        %775 = vset.pattern.permute.xlu0 0
        %776 = vperm.xlu0 %775, %v702
        %v777 = vpop.permute.xlu0 %776
        %780 = vset.pattern.permute.xlu0 0
        %781 = vperm.xlu0 %780, %v703
        %v782 = vpop.permute.xlu0 %781
        %785 = vset.pattern.permute.xlu0 0
        %786 = vperm.xlu0 %785, %v704
        %v787 = vpop.permute.xlu0 %786
        %790 = vset.pattern.permute.xlu0 0
        %791 = vperm.xlu0 %790, %v705
        %v792 = vpop.permute.xlu0 %791
        %795 = vset.pattern.permute.xlu0 0
        %796 = vperm.xlu0 %795, %v706
        %v797 = vpop.permute.xlu0 %796
        %800 = vset.pattern.permute.xlu0 0
        %801 = vperm.xlu0 %800, %v707
        %v802 = vpop.permute.xlu0 %801
        %805 = vset.pattern.permute.xlu0 0
        %806 = vperm.xlu0 %805, %v708
        %v807 = vpop.permute.xlu0 %806
        %810 = vset.pattern.permute.xlu0 0
        %811 = vperm.xlu0 %810, %v709
        %v812 = vpop.permute.xlu0 %811
        %815 = vset.pattern.permute.xlu0 0
        %816 = vperm.xlu0 %815, %v710
        %v817 = vpop.permute.xlu0 %816
        %820 = vset.pattern.permute.xlu0 0
        %821 = vperm.xlu0 %820, %v711
        %v822 = vpop.permute.xlu0 %821
        %825 = vset.pattern.permute.xlu0 0
        %826 = vperm.xlu0 %825, %v712
        %v827 = vpop.permute.xlu0 %826
        %830 = vset.pattern.permute.xlu0 0
        %831 = vperm.xlu0 %830, %v713
        %v832 = vpop.permute.xlu0 %831
        %835 = vset.pattern.permute.xlu0 0
        %836 = vperm.xlu0 %835, %v714
        %v837 = vpop.permute.xlu0 %836
        %840 = vset.pattern.permute.xlu0 0
        %841 = vperm.xlu0 %840, %v715
        %v842 = vpop.permute.xlu0 %841
        %v844 = vsub.f32 %v590, %v767
        %v845 = vsub.f32 %v593, %v772
        %v846 = vsub.f32 %v598, %v777
        %v847 = vsub.f32 %v601, %v782
        %v848 = vsub.f32 %v606, %v787
        %v849 = vsub.f32 %v609, %v792
        %v850 = vsub.f32 %v614, %v797
        %v851 = vsub.f32 %v617, %v802
        %v852 = vsub.f32 %v622, %v807
        %v853 = vsub.f32 %v625, %v812
        %v854 = vsub.f32 %v630, %v817
        %v855 = vsub.f32 %v633, %v822
        %v856 = vsub.f32 %v638, %v827
        %v857 = vsub.f32 %v641, %v832
        %v858 = vsub.f32 %v646, %v837
        %v859 = vsub.f32 %v649, %v842
        %v860 = vmul.f32 %v844, 1.442695
        %v861 = vpow.pop %v860
        %v862 = vmul.f32 %v845, 1.442695
        %v863 = vpow.pop %v862
        %v864 = vmul.f32 %v846, 1.442695
        %v865 = vpow.pop %v864
        %v866 = vmul.f32 %v847, 1.442695
        %v867 = vpow.pop %v866
        %v868 = vmul.f32 %v848, 1.442695
        %v869 = vpow.pop %v868
        %v870 = vmul.f32 %v849, 1.442695
        %v871 = vpow.pop %v870
        %v872 = vmul.f32 %v850, 1.442695
        %v873 = vpow.pop %v872
        %v874 = vmul.f32 %v851, 1.442695
        %v875 = vpow.pop %v874
        %v876 = vmul.f32 %v852, 1.442695
        %v877 = vpow.pop %v876
        %v878 = vmul.f32 %v853, 1.442695
        %v879 = vpow.pop %v878
        %v880 = vmul.f32 %v854, 1.442695
        %v881 = vpow.pop %v880
        %v882 = vmul.f32 %v855, 1.442695
        %v883 = vpow.pop %v882
        %v884 = vmul.f32 %v856, 1.442695
        %v885 = vpow.pop %v884
        %v886 = vmul.f32 %v857, 1.442695
        %v887 = vpow.pop %v886
        %v888 = vmul.f32 %v858, 1.442695
        %v889 = vpow.pop %v888
        %v890 = vmul.f32 %v859, 1.442695
        %v891 = vpow.pop %v890
        %v892 = vld [vmem:[#allocation3] sm:$0xff]
        %v893 = vld [vmem:[#allocation3 + $0x8] sm:$0xff]
        %v894 = vld [vmem:[#allocation3 + $0x10] sm:$0xff]
        %v895 = vld [vmem:[#allocation3 + $0x18] sm:$0xff]
        %v896 = vld [vmem:[#allocation3 + $0x20] sm:$0xff]
        %v897 = vld [vmem:[#allocation3 + $0x28] sm:$0xff]
        %v898 = vld [vmem:[#allocation3 + $0x30] sm:$0xff]
        %v899 = vld [vmem:[#allocation3 + $0x38] sm:$0xff]
        %v900 = vld [vmem:[#allocation3 + $0x40] sm:$0xff]
        %v901 = vld [vmem:[#allocation3 + $0x48] sm:$0xff]
        %v902 = vld [vmem:[#allocation3 + $0x50] sm:$0xff]
        %v903 = vld [vmem:[#allocation3 + $0x58] sm:$0xff]
        %v904 = vld [vmem:[#allocation3 + $0x60] sm:$0xff]
        %v905 = vld [vmem:[#allocation3 + $0x68] sm:$0xff]
        %v906 = vld [vmem:[#allocation3 + $0x70] sm:$0xff]
        %v907 = vld [vmem:[#allocation3 + $0x78] sm:$0xff]
        %v908 = vmul.f32 %v733, %v892
        %v909 = vmul.f32 %v735, %v893
        %v910 = vmul.f32 %v737, %v894
        %v911 = vmul.f32 %v739, %v895
        %v912 = vmul.f32 %v741, %v896
        %v913 = vmul.f32 %v743, %v897
        %v914 = vmul.f32 %v745, %v898
        %v915 = vmul.f32 %v747, %v899
        %v916 = vmul.f32 %v749, %v900
        %v917 = vmul.f32 %v751, %v901
        %v918 = vmul.f32 %v753, %v902
        %v919 = vmul.f32 %v755, %v903
        %v920 = vmul.f32 %v757, %v904
        %v921 = vmul.f32 %v759, %v905
        %v922 = vmul.f32 %v761, %v906
        %v923 = vmul.f32 %v763, %v907
        %924 = vadd.xlane.f32.xlu0 %v861
        %v925 = vpop.xlane.xlu0 %924
        %926 = vadd.xlane.f32.xlu0 %v863
        %v927 = vpop.xlane.xlu0 %926
        %928 = vadd.xlane.f32.xlu0 %v865
        %v929 = vpop.xlane.xlu0 %928
        %930 = vadd.xlane.f32.xlu0 %v867
        %v931 = vpop.xlane.xlu0 %930
        %932 = vadd.xlane.f32.xlu0 %v869
        %v933 = vpop.xlane.xlu0 %932
        %934 = vadd.xlane.f32.xlu0 %v871
        %v935 = vpop.xlane.xlu0 %934
        %936 = vadd.xlane.f32.xlu0 %v873
        %v937 = vpop.xlane.xlu0 %936
        %938 = vadd.xlane.f32.xlu0 %v875
        %v939 = vpop.xlane.xlu0 %938
        %940 = vadd.xlane.f32.xlu0 %v877
        %v941 = vpop.xlane.xlu0 %940
        %942 = vadd.xlane.f32.xlu0 %v879
        %v943 = vpop.xlane.xlu0 %942
        %944 = vadd.xlane.f32.xlu0 %v881
        %v945 = vpop.xlane.xlu0 %944
        %946 = vadd.xlane.f32.xlu0 %v883
        %v947 = vpop.xlane.xlu0 %946
        %948 = vadd.xlane.f32.xlu0 %v885
        %v949 = vpop.xlane.xlu0 %948
        %950 = vadd.xlane.f32.xlu0 %v887
        %v951 = vpop.xlane.xlu0 %950
        %952 = vadd.xlane.f32.xlu0 %v889
        %v953 = vpop.xlane.xlu0 %952
        %954 = vadd.xlane.f32.xlu0 %v891
        %v955 = vpop.xlane.xlu0 %954
        %v956 = vadd.f32 %v908, %v925
        %v957 = vadd.f32 %v909, %v927
        %v958 = vadd.f32 %v910, %v929
        %v959 = vadd.f32 %v911, %v931
        %v960 = vadd.f32 %v912, %v933
        %v961 = vadd.f32 %v913, %v935
        %v962 = vadd.f32 %v914, %v937
        %v963 = vadd.f32 %v915, %v939
        %v964 = vadd.f32 %v916, %v941
        %v965 = vadd.f32 %v917, %v943
        %v966 = vadd.f32 %v918, %v945
        %v967 = vadd.f32 %v919, %v947
        %v968 = vadd.f32 %v920, %v949
        %v969 = vadd.f32 %v921, %v951
        %v970 = vadd.f32 %v922, %v953
        %v971 = vadd.f32 %v923, %v955
        %vm972 = vcmask 7168
        %973 = vst.msk [vmem:[#allocation3] sm:$0xff] %vm972, %v956
        %974 = vst.msk [vmem:[#allocation3 + $0x8] sm:$0xff] %vm972, %v957
        %975 = vst.msk [vmem:[#allocation3 + $0x10] sm:$0xff] %vm972, %v958
        %976 = vst.msk [vmem:[#allocation3 + $0x18] sm:$0xff] %vm972, %v959
        %977 = vst.msk [vmem:[#allocation3 + $0x20] sm:$0xff] %vm972, %v960
        %978 = vst.msk [vmem:[#allocation3 + $0x28] sm:$0xff] %vm972, %v961
        %979 = vst.msk [vmem:[#allocation3 + $0x30] sm:$0xff] %vm972, %v962
        %980 = vst.msk [vmem:[#allocation3 + $0x38] sm:$0xff] %vm972, %v963
        %981 = vst.msk [vmem:[#allocation3 + $0x40] sm:$0xff] %vm972, %v964
        %982 = vst.msk [vmem:[#allocation3 + $0x48] sm:$0xff] %vm972, %v965
        %983 = vst.msk [vmem:[#allocation3 + $0x50] sm:$0xff] %vm972, %v966
        %984 = vst.msk [vmem:[#allocation3 + $0x58] sm:$0xff] %vm972, %v967
        %985 = vst.msk [vmem:[#allocation3 + $0x60] sm:$0xff] %vm972, %v968
        %986 = vst.msk [vmem:[#allocation3 + $0x68] sm:$0xff] %vm972, %v969
        %987 = vst.msk [vmem:[#allocation3 + $0x70] sm:$0xff] %vm972, %v970
        %988 = vst.msk [vmem:[#allocation3 + $0x78] sm:$0xff] %vm972, %v971
        %v989 = vld [vmem:[#allocation4] sm:$0xff]
        %v990 = vld [vmem:[#allocation4 + $0x8] sm:$0xff]
        %v991 = vld [vmem:[#allocation4 + $0x10] sm:$0xff]
        %v992 = vld [vmem:[#allocation4 + $0x18] sm:$0xff]
        %v993 = vld [vmem:[#allocation4 + $0x20] sm:$0xff]
        %v994 = vld [vmem:[#allocation4 + $0x28] sm:$0xff]
        %v995 = vld [vmem:[#allocation4 + $0x30] sm:$0xff]
        %v996 = vld [vmem:[#allocation4 + $0x38] sm:$0xff]
        %v997 = vld [vmem:[#allocation4 + $0x40] sm:$0xff]
        %v998 = vld [vmem:[#allocation4 + $0x48] sm:$0xff]
        %v999 = vld [vmem:[#allocation4 + $0x50] sm:$0xff]
        %v1000 = vld [vmem:[#allocation4 + $0x58] sm:$0xff]
        %v1001 = vld [vmem:[#allocation4 + $0x60] sm:$0xff]
        %v1002 = vld [vmem:[#allocation4 + $0x68] sm:$0xff]
        %v1003 = vld [vmem:[#allocation4 + $0x70] sm:$0xff]
        %v1004 = vld [vmem:[#allocation4 + $0x78] sm:$0xff]
        %1006 = vset.pattern.permute.xlu0 0
        %1007 = vperm.xlu0 %1006, %v733
        %v1008 = vpop.permute.xlu0 %1007
        %1011 = vset.pattern.permute.xlu0 0
        %1012 = vperm.xlu0 %1011, %v735
        %v1013 = vpop.permute.xlu0 %1012
        %1016 = vset.pattern.permute.xlu0 0
        %1017 = vperm.xlu0 %1016, %v737
        %v1018 = vpop.permute.xlu0 %1017
        %1021 = vset.pattern.permute.xlu0 0
        %1022 = vperm.xlu0 %1021, %v739
        %v1023 = vpop.permute.xlu0 %1022
        %1026 = vset.pattern.permute.xlu0 0
        %1027 = vperm.xlu0 %1026, %v741
        %v1028 = vpop.permute.xlu0 %1027
        %1031 = vset.pattern.permute.xlu0 0
        %1032 = vperm.xlu0 %1031, %v743
        %v1033 = vpop.permute.xlu0 %1032
        %1036 = vset.pattern.permute.xlu0 0
        %1037 = vperm.xlu0 %1036, %v745
        %v1038 = vpop.permute.xlu0 %1037
        %1041 = vset.pattern.permute.xlu0 0
        %1042 = vperm.xlu0 %1041, %v747
        %v1043 = vpop.permute.xlu0 %1042
        %1046 = vset.pattern.permute.xlu0 0
        %1047 = vperm.xlu0 %1046, %v749
        %v1048 = vpop.permute.xlu0 %1047
        %1051 = vset.pattern.permute.xlu0 0
        %1052 = vperm.xlu0 %1051, %v751
        %v1053 = vpop.permute.xlu0 %1052
        %1056 = vset.pattern.permute.xlu0 0
        %1057 = vperm.xlu0 %1056, %v753
        %v1058 = vpop.permute.xlu0 %1057
        %1061 = vset.pattern.permute.xlu0 0
        %1062 = vperm.xlu0 %1061, %v755
        %v1063 = vpop.permute.xlu0 %1062
        %1066 = vset.pattern.permute.xlu0 0
        %1067 = vperm.xlu0 %1066, %v757
        %v1068 = vpop.permute.xlu0 %1067
        %1071 = vset.pattern.permute.xlu0 0
        %1072 = vperm.xlu0 %1071, %v759
        %v1073 = vpop.permute.xlu0 %1072
        %1076 = vset.pattern.permute.xlu0 0
        %1077 = vperm.xlu0 %1076, %v761
        %v1078 = vpop.permute.xlu0 %1077
        %1081 = vset.pattern.permute.xlu0 0
        %1082 = vperm.xlu0 %1081, %v763
        %v1083 = vpop.permute.xlu0 %1082
        %v1085 = vmul.f32 %v1008, %v989
        %v1086 = vmul.f32 %v1013, %v990
        %v1087 = vmul.f32 %v1018, %v991
        %v1088 = vmul.f32 %v1023, %v992
        %v1089 = vmul.f32 %v1028, %v993
        %v1090 = vmul.f32 %v1033, %v994
        %v1091 = vmul.f32 %v1038, %v995
        %v1092 = vmul.f32 %v1043, %v996
        %v1093 = vmul.f32 %v1048, %v997
        %v1094 = vmul.f32 %v1053, %v998
        %v1095 = vmul.f32 %v1058, %v999
        %v1096 = vmul.f32 %v1063, %v1000
        %v1097 = vmul.f32 %v1068, %v1001
        %v1098 = vmul.f32 %v1073, %v1002
        %v1099 = vmul.f32 %v1078, %v1003
        %v1100 = vmul.f32 %v1083, %v1004
        %v1101 = vpack.c.bf16 %v863, %v861
        %v1102 = vpack.c.bf16 %v867, %v865
        %v1103 = vpack.c.bf16 %v871, %v869
        %v1104 = vpack.c.bf16 %v875, %v873
        %v1105 = vpack.c.bf16 %v879, %v877
        %v1106 = vpack.c.bf16 %v883, %v881
        %v1107 = vpack.c.bf16 %v887, %v885
        %v1108 = vpack.c.bf16 %v891, %v889
        %1117 = vmatprep.subr.bf16.mxu0 0
        %1118 = vmatpush1.bf16.msra.mxu0 %v482
        %1119 = vmatprep.subr.bf16.mxu0 0
        %1120 = vmatpush1.bf16.msra.mxu0 %v483
        %1121 = vmatprep.subr.bf16.mxu0 0
        %1122 = vmatpush1.bf16.msra.mxu0 %v484
        %1123 = vmatprep.subr.bf16.mxu0 0
        %1124 = vmatpush1.bf16.msra.mxu0 %v485
        %1125 = vmatprep.subr.bf16.mxu0 0
        %1126 = vmatpush1.bf16.msra.mxu0 %v486
        %1127 = vmatprep.subr.bf16.mxu0 0
        %1128 = vmatpush1.bf16.msra.mxu0 %v487
        %1129 = vmatprep.subr.bf16.mxu0 0
        %1130 = vmatpush1.bf16.msra.mxu0 %v488
        %1131 = vmatprep.subr.bf16.mxu0 0
        %1132 = vmatpush1.bf16.msra.mxu0 %v489
        %1133 = vmatprep.subr.bf16.mxu0 0
        %1134 = vmatpush1.bf16.msra.mxu0 0
        %1135 = vmatprep.subr.bf16.mxu0 0
        %1136 = vmatpush1.bf16.msra.mxu0 0
        %1137 = vmatprep.subr.bf16.mxu0 0
        %1138 = vmatpush1.bf16.msra.mxu0 0
        %1139 = vmatprep.subr.bf16.mxu0 0
        %1140 = vmatpush1.bf16.msra.mxu0 0
        %1141 = vmatprep.subr.bf16.mxu0 0
        %1142 = vmatpush1.bf16.msra.mxu0 0
        %1143 = vmatprep.subr.bf16.mxu0 0
        %1144 = vmatpush1.bf16.msra.mxu0 0
        %1145 = vmatprep.subr.bf16.mxu0 0
        %1146 = vmatpush1.bf16.msra.mxu0 0
        %1147 = vmatprep.subr.bf16.mxu0 0
        %1148 = vmatpush1.bf16.msra.mxu0 0
        %1149 = vmatprep.mubr.bf16.mxu0 0
        %1150 = vmatmul.mubr.bf16.gmra.mrb[0].mxu0 %v1101
        %v1151 = vpop.f32.mrb[0].mxu0
        %v1152 = vadd.f32 0.0, %v1151
        %v1153 = vpop.f32.mrb[0].mxu0
        %v1154 = vpop.f32.mrb[0].mxu0
        %v1155 = vadd.f32 0.0, %v1154
        %v1156 = vpop.f32.mrb[0].mxu0
        %1157 = vmatprep.mubr.bf16.mxu0 0
        %1158 = vmatmul.mubr.bf16.gmra.mrb[0].mxu0 %v1102
        %v1159 = vpop.f32.mrb[0].mxu0
        %v1160 = vadd.f32 0.0, %v1159
        %v1161 = vpop.f32.mrb[0].mxu0
        %v1162 = vpop.f32.mrb[0].mxu0
        %v1163 = vadd.f32 0.0, %v1162
        %v1164 = vpop.f32.mrb[0].mxu0
        %1165 = vmatprep.mubr.bf16.mxu0 0
        %1166 = vmatmul.mubr.bf16.gmra.mrb[0].mxu0 %v1103
        %v1167 = vpop.f32.mrb[0].mxu0
        %v1168 = vadd.f32 0.0, %v1167
        %v1169 = vpop.f32.mrb[0].mxu0
        %v1170 = vpop.f32.mrb[0].mxu0
        %v1171 = vadd.f32 0.0, %v1170
        %v1172 = vpop.f32.mrb[0].mxu0
        %1173 = vmatprep.mubr.bf16.mxu0 0
        %1174 = vmatmul.mubr.bf16.gmra.mrb[0].mxu0 %v1104
        %v1175 = vpop.f32.mrb[0].mxu0
        %v1176 = vadd.f32 0.0, %v1175
        %v1177 = vpop.f32.mrb[0].mxu0
        %v1178 = vpop.f32.mrb[0].mxu0
        %v1179 = vadd.f32 0.0, %v1178
        %v1180 = vpop.f32.mrb[0].mxu0
        %1181 = vmatprep.mubr.bf16.mxu0 0
        %1182 = vmatmul.mubr.bf16.gmra.mrb[0].mxu0 %v1105
        %v1183 = vpop.f32.mrb[0].mxu0
        %v1184 = vadd.f32 0.0, %v1183
        %v1185 = vpop.f32.mrb[0].mxu0
        %v1186 = vpop.f32.mrb[0].mxu0
        %v1187 = vadd.f32 0.0, %v1186
        %v1188 = vpop.f32.mrb[0].mxu0
        %1189 = vmatprep.mubr.bf16.mxu0 0
        %1190 = vmatmul.mubr.bf16.gmra.mrb[0].mxu0 %v1106
        %v1191 = vpop.f32.mrb[0].mxu0
        %v1192 = vadd.f32 0.0, %v1191
        %v1193 = vpop.f32.mrb[0].mxu0
        %v1194 = vpop.f32.mrb[0].mxu0
        %v1195 = vadd.f32 0.0, %v1194
        %v1196 = vpop.f32.mrb[0].mxu0
        %1197 = vmatprep.mubr.bf16.mxu0 0
        %1198 = vmatmul.mubr.bf16.gmra.mrb[0].mxu0 %v1107
        %v1199 = vpop.f32.mrb[0].mxu0
        %v1200 = vadd.f32 0.0, %v1199
        %v1201 = vpop.f32.mrb[0].mxu0
        %v1202 = vpop.f32.mrb[0].mxu0
        %v1203 = vadd.f32 0.0, %v1202
        %v1204 = vpop.f32.mrb[0].mxu0
        %1205 = vmatprep.mubr.bf16.mxu0 0
        %1206 = vmatmul.mubr.bf16.gmra.mrb[0].mxu0 %v1108
        %v1207 = vpop.f32.mrb[0].mxu0
        %v1208 = vadd.f32 0.0, %v1207
        %v1209 = vpop.f32.mrb[0].mxu0
        %v1210 = vpop.f32.mrb[0].mxu0
        %v1211 = vadd.f32 0.0, %v1210
        %v1212 = vpop.f32.mrb[0].mxu0
        %1213 = vdwg.mxu0
        %v1214 = vadd.f32 %v1085, %v1152
        %v1215 = vadd.f32 %v1086, %v1155
        %v1216 = vadd.f32 %v1087, %v1160
        %v1217 = vadd.f32 %v1088, %v1163
        %v1218 = vadd.f32 %v1089, %v1168
        %v1219 = vadd.f32 %v1090, %v1171
        %v1220 = vadd.f32 %v1091, %v1176
        %v1221 = vadd.f32 %v1092, %v1179
        %v1222 = vadd.f32 %v1093, %v1184
        %v1223 = vadd.f32 %v1094, %v1187
        %v1224 = vadd.f32 %v1095, %v1192
        %v1225 = vadd.f32 %v1096, %v1195
        %v1226 = vadd.f32 %v1097, %v1200
        %v1227 = vadd.f32 %v1098, %v1203
        %v1228 = vadd.f32 %v1099, %v1208
        %v1229 = vadd.f32 %v1100, %v1211
        %vm1230 = vcmask 523264
        %1231 = vst.msk [vmem:[#allocation4] sm:$0xff] %vm1230, %v1214
        %1232 = vst.msk [vmem:[#allocation4 + $0x8] sm:$0xff] %vm1230, %v1215
        %1233 = vst.msk [vmem:[#allocation4 + $0x10] sm:$0xff] %vm1230, %v1216
        %1234 = vst.msk [vmem:[#allocation4 + $0x18] sm:$0xff] %vm1230, %v1217
        %1235 = vst.msk [vmem:[#allocation4 + $0x20] sm:$0xff] %vm1230, %v1218
        %1236 = vst.msk [vmem:[#allocation4 + $0x28] sm:$0xff] %vm1230, %v1219
        %1237 = vst.msk [vmem:[#allocation4 + $0x30] sm:$0xff] %vm1230, %v1220
        %1238 = vst.msk [vmem:[#allocation4 + $0x38] sm:$0xff] %vm1230, %v1221
        %1239 = vst.msk [vmem:[#allocation4 + $0x40] sm:$0xff] %vm1230, %v1222
        %1240 = vst.msk [vmem:[#allocation4 + $0x48] sm:$0xff] %vm1230, %v1223
        %1241 = vst.msk [vmem:[#allocation4 + $0x50] sm:$0xff] %vm1230, %v1224
        %1242 = vst.msk [vmem:[#allocation4 + $0x58] sm:$0xff] %vm1230, %v1225
        %1243 = vst.msk [vmem:[#allocation4 + $0x60] sm:$0xff] %vm1230, %v1226
        %1244 = vst.msk [vmem:[#allocation4 + $0x68] sm:$0xff] %vm1230, %v1227
        %1245 = vst.msk [vmem:[#allocation4 + $0x70] sm:$0xff] %vm1230, %v1228
        %1246 = vst.msk [vmem:[#allocation4 + $0x78] sm:$0xff] %vm1230, %v1229
        %1247 = vst.msk [vmem:[#allocation2] sm:$0xff] %vm972, %v700
        %1248 = vst.msk [vmem:[#allocation2 + $0x8] sm:$0xff] %vm972, %v701
        %1249 = vst.msk [vmem:[#allocation2 + $0x10] sm:$0xff] %vm972, %v702
        %1250 = vst.msk [vmem:[#allocation2 + $0x18] sm:$0xff] %vm972, %v703
        %1251 = vst.msk [vmem:[#allocation2 + $0x20] sm:$0xff] %vm972, %v704
        %1252 = vst.msk [vmem:[#allocation2 + $0x28] sm:$0xff] %vm972, %v705
        %1253 = vst.msk [vmem:[#allocation2 + $0x30] sm:$0xff] %vm972, %v706
        %1254 = vst.msk [vmem:[#allocation2 + $0x38] sm:$0xff] %vm972, %v707
        %1255 = vst.msk [vmem:[#allocation2 + $0x40] sm:$0xff] %vm972, %v708
        %1256 = vst.msk [vmem:[#allocation2 + $0x48] sm:$0xff] %vm972, %v709
        %1257 = vst.msk [vmem:[#allocation2 + $0x50] sm:$0xff] %vm972, %v710
        %1258 = vst.msk [vmem:[#allocation2 + $0x58] sm:$0xff] %vm972, %v711
        %1259 = vst.msk [vmem:[#allocation2 + $0x60] sm:$0xff] %vm972, %v712
        %1260 = vst.msk [vmem:[#allocation2 + $0x68] sm:$0xff] %vm972, %v713
        %1261 = vst.msk [vmem:[#allocation2 + $0x70] sm:$0xff] %vm972, %v714
        %1262 = vst.msk [vmem:[#allocation2 + $0x78] sm:$0xff] %vm972, %v715
        %p1263 = scmp.eq.s32.totalorder %s26, 1
        // Predicated region
        $region41: #{self_attention.3} parent=35 // pred_check
          %p1264 = pneg %p1263
        $region42: #{self_attention.3} parent=35 // pred_check_branch
          %1266 = sbr.rel (%p1264) target = $region44
        $region43: #{self_attention.3} parent=35 // pred_region
          %v1267 = vld [vmem:[#allocation3] sm:$0xff]
          %v1268 = vld [vmem:[#allocation3 + $0x8] sm:$0xff]
          %v1269 = vld [vmem:[#allocation3 + $0x10] sm:$0xff]
          %v1270 = vld [vmem:[#allocation3 + $0x18] sm:$0xff]
          %v1271 = vld [vmem:[#allocation3 + $0x20] sm:$0xff]
          %v1272 = vld [vmem:[#allocation3 + $0x28] sm:$0xff]
          %v1273 = vld [vmem:[#allocation3 + $0x30] sm:$0xff]
          %v1274 = vld [vmem:[#allocation3 + $0x38] sm:$0xff]
          %v1275 = vld [vmem:[#allocation3 + $0x40] sm:$0xff]
          %v1276 = vld [vmem:[#allocation3 + $0x48] sm:$0xff]
          %v1277 = vld [vmem:[#allocation3 + $0x50] sm:$0xff]
          %v1278 = vld [vmem:[#allocation3 + $0x58] sm:$0xff]
          %v1279 = vld [vmem:[#allocation3 + $0x60] sm:$0xff]
          %v1280 = vld [vmem:[#allocation3 + $0x68] sm:$0xff]
          %v1281 = vld [vmem:[#allocation3 + $0x70] sm:$0xff]
          %v1282 = vld [vmem:[#allocation3 + $0x78] sm:$0xff]
          %v1283 = vrcp.pop %v1267
          %v1284 = vrcp.pop %v1268
          %v1285 = vrcp.pop %v1269
          %v1286 = vrcp.pop %v1270
          %v1287 = vrcp.pop %v1271
          %v1288 = vrcp.pop %v1272
          %v1289 = vrcp.pop %v1273
          %v1290 = vrcp.pop %v1274
          %v1291 = vrcp.pop %v1275
          %v1292 = vrcp.pop %v1276
          %v1293 = vrcp.pop %v1277
          %v1294 = vrcp.pop %v1278
          %v1295 = vrcp.pop %v1279
          %v1296 = vrcp.pop %v1280
          %v1297 = vrcp.pop %v1281
          %v1298 = vrcp.pop %v1282
          %v1299 = vld [vmem:[#allocation4] sm:$0xff]
          %v1300 = vld [vmem:[#allocation4 + $0x8] sm:$0xff]
          %v1301 = vld [vmem:[#allocation4 + $0x10] sm:$0xff]
          %v1302 = vld [vmem:[#allocation4 + $0x18] sm:$0xff]
          %v1303 = vld [vmem:[#allocation4 + $0x20] sm:$0xff]
          %v1304 = vld [vmem:[#allocation4 + $0x28] sm:$0xff]
          %v1305 = vld [vmem:[#allocation4 + $0x30] sm:$0xff]
          %v1306 = vld [vmem:[#allocation4 + $0x38] sm:$0xff]
          %v1307 = vld [vmem:[#allocation4 + $0x40] sm:$0xff]
          %v1308 = vld [vmem:[#allocation4 + $0x48] sm:$0xff]
          %v1309 = vld [vmem:[#allocation4 + $0x50] sm:$0xff]
          %v1310 = vld [vmem:[#allocation4 + $0x58] sm:$0xff]
          %v1311 = vld [vmem:[#allocation4 + $0x60] sm:$0xff]
          %v1312 = vld [vmem:[#allocation4 + $0x68] sm:$0xff]
          %v1313 = vld [vmem:[#allocation4 + $0x70] sm:$0xff]
          %v1314 = vld [vmem:[#allocation4 + $0x78] sm:$0xff]
          %1316 = vset.pattern.permute.xlu0 0
          %1317 = vperm.xlu0 %1316, %v1283
          %v1318 = vpop.permute.xlu0 %1317
          %1321 = vset.pattern.permute.xlu0 0
          %1322 = vperm.xlu0 %1321, %v1284
          %v1323 = vpop.permute.xlu0 %1322
          %1326 = vset.pattern.permute.xlu0 0
          %1327 = vperm.xlu0 %1326, %v1285
          %v1328 = vpop.permute.xlu0 %1327
          %1331 = vset.pattern.permute.xlu0 0
          %1332 = vperm.xlu0 %1331, %v1286
          %v1333 = vpop.permute.xlu0 %1332
          %1336 = vset.pattern.permute.xlu0 0
          %1337 = vperm.xlu0 %1336, %v1287
          %v1338 = vpop.permute.xlu0 %1337
          %1341 = vset.pattern.permute.xlu0 0
          %1342 = vperm.xlu0 %1341, %v1288
          %v1343 = vpop.permute.xlu0 %1342
          %1346 = vset.pattern.permute.xlu0 0
          %1347 = vperm.xlu0 %1346, %v1289
          %v1348 = vpop.permute.xlu0 %1347
          %1351 = vset.pattern.permute.xlu0 0
          %1352 = vperm.xlu0 %1351, %v1290
          %v1353 = vpop.permute.xlu0 %1352
          %1356 = vset.pattern.permute.xlu0 0
          %1357 = vperm.xlu0 %1356, %v1291
          %v1358 = vpop.permute.xlu0 %1357
          %1361 = vset.pattern.permute.xlu0 0
          %1362 = vperm.xlu0 %1361, %v1292
          %v1363 = vpop.permute.xlu0 %1362
          %1366 = vset.pattern.permute.xlu0 0
          %1367 = vperm.xlu0 %1366, %v1293
          %v1368 = vpop.permute.xlu0 %1367
          %1371 = vset.pattern.permute.xlu0 0
          %1372 = vperm.xlu0 %1371, %v1294
          %v1373 = vpop.permute.xlu0 %1372
          %1376 = vset.pattern.permute.xlu0 0
          %1377 = vperm.xlu0 %1376, %v1295
          %v1378 = vpop.permute.xlu0 %1377
          %1381 = vset.pattern.permute.xlu0 0
          %1382 = vperm.xlu0 %1381, %v1296
          %v1383 = vpop.permute.xlu0 %1382
          %1386 = vset.pattern.permute.xlu0 0
          %1387 = vperm.xlu0 %1386, %v1297
          %v1388 = vpop.permute.xlu0 %1387
          %1391 = vset.pattern.permute.xlu0 0
          %1392 = vperm.xlu0 %1391, %v1298
          %v1393 = vpop.permute.xlu0 %1392
          %v1395 = vmul.f32 %v1299, %v1318
          %v1396 = vmul.f32 %v1300, %v1323
          %v1397 = vmul.f32 %v1301, %v1328
          %v1398 = vmul.f32 %v1302, %v1333
          %v1399 = vmul.f32 %v1303, %v1338
          %v1400 = vmul.f32 %v1304, %v1343
          %v1401 = vmul.f32 %v1305, %v1348
          %v1402 = vmul.f32 %v1306, %v1353
          %v1403 = vmul.f32 %v1307, %v1358
          %v1404 = vmul.f32 %v1308, %v1363
          %v1405 = vmul.f32 %v1309, %v1368
          %v1406 = vmul.f32 %v1310, %v1373
          %v1407 = vmul.f32 %v1311, %v1378
          %v1408 = vmul.f32 %v1312, %v1383
          %v1409 = vmul.f32 %v1313, %v1388
          %v1410 = vmul.f32 %v1314, %v1393
          %s1411 = sld [smem:[#allocation5]]
          %v1412 = vstv %s1411
          %v1413 = vmul.f32 %v1412, %v1395
          %v1414 = vmul.f32 %v1412, %v1396
          %v1415 = vmul.f32 %v1412, %v1397
          %v1416 = vmul.f32 %v1412, %v1398
          %v1417 = vmul.f32 %v1412, %v1399
          %v1418 = vmul.f32 %v1412, %v1400
          %v1419 = vmul.f32 %v1412, %v1401
          %v1420 = vmul.f32 %v1412, %v1402
          %v1421 = vmul.f32 %v1412, %v1403
          %v1422 = vmul.f32 %v1412, %v1404
          %v1423 = vmul.f32 %v1412, %v1405
          %v1424 = vmul.f32 %v1412, %v1406
          %v1425 = vmul.f32 %v1412, %v1407
          %v1426 = vmul.f32 %v1412, %v1408
          %v1427 = vmul.f32 %v1412, %v1409
          %v1428 = vmul.f32 %v1412, %v1410
          %v1429 = vld [vmem:[%s304] sm:$0xff]
          %v1430 = vld [vmem:[%s304 + $0x8] sm:$0xff]
          %v1431 = vld [vmem:[%s304 + $0x10] sm:$0xff]
          %v1432 = vld [vmem:[%s304 + $0x18] sm:$0xff]
          %v1433 = vld [vmem:[%s304 + $0x20] sm:$0xff]
          %v1434 = vld [vmem:[%s304 + $0x28] sm:$0xff]
          %v1435 = vld [vmem:[%s304 + $0x30] sm:$0xff]
          %v1436 = vld [vmem:[%s304 + $0x38] sm:$0xff]
          %v1437 = vld [vmem:[%s304 + $0x40] sm:$0xff]
          %v1438 = vld [vmem:[%s304 + $0x48] sm:$0xff]
          %v1439 = vld [vmem:[%s304 + $0x50] sm:$0xff]
          %v1440 = vld [vmem:[%s304 + $0x58] sm:$0xff]
          %v1441 = vld [vmem:[%s304 + $0x60] sm:$0xff]
          %v1442 = vld [vmem:[%s304 + $0x68] sm:$0xff]
          %v1443 = vld [vmem:[%s304 + $0x70] sm:$0xff]
          %v1444 = vld [vmem:[%s304 + $0x78] sm:$0xff]
          %v1445 = vadd.f32 %v1413, %v1429
          %v1446 = vadd.f32 %v1414, %v1430
          %v1447 = vadd.f32 %v1415, %v1431
          %v1448 = vadd.f32 %v1416, %v1432
          %v1449 = vadd.f32 %v1417, %v1433
          %v1450 = vadd.f32 %v1418, %v1434
          %v1451 = vadd.f32 %v1419, %v1435
          %v1452 = vadd.f32 %v1420, %v1436
          %v1453 = vadd.f32 %v1421, %v1437
          %v1454 = vadd.f32 %v1422, %v1438
          %v1455 = vadd.f32 %v1423, %v1439
          %v1456 = vadd.f32 %v1424, %v1440
          %v1457 = vadd.f32 %v1425, %v1441
          %v1458 = vadd.f32 %v1426, %v1442
          %v1459 = vadd.f32 %v1427, %v1443
          %v1460 = vadd.f32 %v1428, %v1444
          %1461 = vst.msk [vmem:[%s275] sm:$0xff] %vm1230, %v1445
          %1462 = vst.msk [vmem:[%s275 + $0x8] sm:$0xff] %vm1230, %v1446
          %1463 = vst.msk [vmem:[%s275 + $0x10] sm:$0xff] %vm1230, %v1447
          %1464 = vst.msk [vmem:[%s275 + $0x18] sm:$0xff] %vm1230, %v1448
          %1465 = vst.msk [vmem:[%s275 + $0x20] sm:$0xff] %vm1230, %v1449
          %1466 = vst.msk [vmem:[%s275 + $0x28] sm:$0xff] %vm1230, %v1450
          %1467 = vst.msk [vmem:[%s275 + $0x30] sm:$0xff] %vm1230, %v1451
          %1468 = vst.msk [vmem:[%s275 + $0x38] sm:$0xff] %vm1230, %v1452
          %1469 = vst.msk [vmem:[%s275 + $0x40] sm:$0xff] %vm1230, %v1453
          %1470 = vst.msk [vmem:[%s275 + $0x48] sm:$0xff] %vm1230, %v1454
          %1471 = vst.msk [vmem:[%s275 + $0x50] sm:$0xff] %vm1230, %v1455
          %1472 = vst.msk [vmem:[%s275 + $0x58] sm:$0xff] %vm1230, %v1456
          %1473 = vst.msk [vmem:[%s275 + $0x60] sm:$0xff] %vm1230, %v1457
          %1474 = vst.msk [vmem:[%s275 + $0x68] sm:$0xff] %vm1230, %v1458
          %1475 = vst.msk [vmem:[%s275 + $0x70] sm:$0xff] %vm1230, %v1459
          %1476 = vst.msk [vmem:[%s275 + $0x78] sm:$0xff] %vm1230, %v1460
        $region44: #{self_attention.3} parent=35 // pred_fallthru
          _
        %s1477 = sand.u32 %s153, 1
        %s1478 = scalar_lea.sflag [#allocation7], %s1477
        %s1479 = sand.u32 %s153, 1
        %s1480 = smul.addr %s1479, 128
        %s1481 = scalar_lea.vmem [#allocation6], %s1480
        // Predicated region
        $region45: #{self_attention.3} parent=35 // pred_check
          %p1482 = pneg %p163
        $region46: #{self_attention.3} parent=35 // pred_check_branch
          %1484 = sbr.rel (%p1482) target = $region48
        $region47: #{self_attention.3} parent=35 // pred_region
          %s1485 = smul.u32 16, %s25
          %s1487 = ssub.s32 2048, 2048
          %1488 = vsyncadd %s1478, %s1487
          %s1489 = smul.addr %s24, 32
          %s1490 = sadd.s32 %s1485, %s1489
          %s1491 = smul.addr %s1490, 128
          %s1492 = scalar_lea.hbm %s4, %s1491
          %s1493 = sshll.u32 %s1481, 4
          %s1494 = int_to_ptr.vmem [resolvable:$true] %s1493
          %1499 = dma.vmem_to_hbm [thread:$0]  %s1494, 2048, %s1492, %s1478, 128, 128, 8
        $region48: #{self_attention.3} parent=35 // pred_fallthru
          _
      $region36: #{self_attention.3} parent=5 // pred_fallthru
        _
      %p1500 = scmp.le.s32.totalorder 2, %s14
      // Predicated region
      $region49: #{self_attention.3} parent=5 // pred_check
        %p1501 = pneg %p1500
      $region50: #{self_attention.3} parent=5 // pred_check_branch
        %1503 = sbr.rel (%p1501) target = $region52
      $region51: #{self_attention.3} parent=5 // pred_region
        %s1504 = ssub.s32 %s14, 2
        // Predicated region
        $region53: #{self_attention.3} parent=51 // pred_check
          %p1505 = pneg %p169
        $region54: #{self_attention.3} parent=51 // pred_check_branch
          %1507 = sbr.rel (%p1505) target = $region56
        $region55: #{self_attention.3} parent=51 // pred_region
          %s1508 = sand.u32 %s154, 1
          %s1509 = scalar_lea.sflag [#allocation7], %s1508
          %s1510 = sand.u32 %s154, 1
          %s1511 = smul.addr %s1510, 128
          %s1512 = scalar_lea.vmem [#allocation6], %s1511
          %1513 = dma.done %s1509, 2048
        $region56: #{self_attention.3} parent=51 // pred_fallthru
          _
      $region52: #{self_attention.3} parent=5 // pred_fallthru
        _
    $region6: #{self_attention.3} parent=1 // loop_footer
      %s18 = sadd.s32 1, %s14
    $region7: #{self_attention.3} parent=1 // loop_footer_branch
      %13 = sbr.rel target = $region3
    $region8: #{self_attention.3} parent=1 // loop_exit
      _
    %1514 = vsyncpa [#allocation7], 1
    %s1515 = scalar_lea.sflag [#allocation7], 1
    %1516 = vsyncpa %s1515, 1

</llo_original>
